<compile_context>
chip_gen: v6e
topology: v6e:2x2x1
jax: 0.10.0
libtpu: 0.0.40
codegen_flags: <defaults>
</compile_context>

<pallas_src>
import jax
import jax.numpy as jnp
from jax.experimental import pallas as pl
from jax.experimental.pallas import tpu as pltpu


# ---------------------------------------------------------------------------
# Model configuration (small, consistent with the module)
# ---------------------------------------------------------------------------
B = 2          # batch
N = 16         # query sequence length
S = 8          # key/value sequence length
C = 32         # dim
H = 4          # num_heads
HD = C // H    # head_dim
MLP_RATIO = 4.0
HID = int(C * MLP_RATIO)   # mlp hidden
T = 16         # temporal_dim
EPS = 1e-5     # nn.LayerNorm default eps
SCALE = HD ** (-0.5)       # qk_scale default
BN = B * N
BS = B * S
HBS = H * B * S


# ---------------------------------------------------------------------------
# Kernel helpers
# ---------------------------------------------------------------------------
def _layernorm(x, g, b):
    mu = jnp.mean(x, axis=-1, keepdims=True)
    var = jnp.mean((x - mu) ** 2, axis=-1, keepdims=True)
    return (x - mu) * jax.lax.rsqrt(var + EPS) * g + b


def _modulate(x, shift, scale):
    return x * (1.0 + scale) + shift


def _gelu_exact(x):
    # nn.GELU default (exact, erf-based)
    return 0.5 * x * (1.0 + jax.lax.erf(x / jnp.sqrt(2.0).astype(x.dtype)))


# ---------------------------------------------------------------------------
# Kernel
# ---------------------------------------------------------------------------
def cross_attn_kernel(q_ref, k_ref, modq_ref, modkv_ref, pvec_ref, w4_ref,
                      w1_ref, b1_ref, w2_ref, hmask_ref, neg_ref, o_ref):
    q_in = q_ref[...]            # (B*N, C)
    k_in = k_ref[...]            # (B*S, C)
    pvec = pvec_ref[...]         # (8, C): g_q, b_q, g_k, b_k, g_2, b_2, bo, b2m

    g_q, b_q = pvec[0:1], pvec[1:2]
    g_k, b_k = pvec[2:3], pvec[3:4]
    g_2, b_2 = pvec[4:5], pvec[5:6]
    bo, b2m = pvec[6:7], pvec[7:8]

    # adaLN modulation vectors: pre-broadcast per-row, leading-dim indexed (relayout-free).
    shift_q, scale_q = modq_ref[0], modq_ref[1]          # (B*N, C)
    gate_msa = modq_ref[2]
    shift_mlp, scale_mlp = modq_ref[3], modq_ref[4]
    gate_mlp = modq_ref[5]
    shift_kv, scale_kv = modkv_ref[0], modkv_ref[1]      # (B*S, C)

    # ---- pre-norm + modulation ---------------------------------------------------
    qn = _modulate(_layernorm(q_in, g_q, b_q), shift_q, scale_q)    # (B*N, C)
    kn = _modulate(_layernorm(k_in, g_k, b_k), shift_kv, scale_kv)  # (B*S, C)

    # ---- projections (separate contraction-32 pushes; no unaligned kv split) -----
    q = jnp.dot(qn, w4_ref[0], preferred_element_type=jnp.float32)  # (B*N, C)
    k = jnp.dot(kn, w4_ref[1], preferred_element_type=jnp.float32)  # (B*S, C)
    v = jnp.dot(kn, w4_ref[2], preferred_element_type=jnp.float32)  # (B*S, C)

    # ---- block-diagonal all-heads attention ---------------------------------------
    # hmask[h*BS+j, c] = 1 iff c // HD == h ; so k_hat/v_hat hold head h's channels in
    # row block h and zeros elsewhere -> one matmul computes all per-head score blocks.
    hmask = hmask_ref[...]                                           # (H*B*S, C)
    k_hat = jnp.tile(k, (H, 1)) * hmask                              # (H*B*S, C)
    v_hat = jnp.tile(v, (H, 1)) * hmask                              # (H*B*S, C)

    # scores[i, h*BS + j] = q_h[i] . k_h[j] ; additive mask keeps flattened batches apart.
    s = jax.lax.dot_general(q, k_hat, (((1,), (1,)), ((), ())),
                            preferred_element_type=jnp.float32) * SCALE + neg_ref[...]  # (B*N, H*B*S)

    # Single shared per-row max across all head segments (mathematically exact).
    m = jnp.max(s, axis=-1, keepdims=True)
    e = jnp.exp(s - m)                                               # masked cols underflow to 0

    # Unnormalized context and per-channel (= per-head) denominators, one MXU push each.
    ctx_un = jnp.dot(e, v_hat, preferred_element_type=jnp.float32)   # (B*N, C)
    den_c = jnp.dot(e, hmask, preferred_element_type=jnp.float32)    # (B*N, C)
    attn_ctx = ctx_un / den_c                                         # exact divide (bit-close parity)

    attn_out = jnp.dot(attn_ctx, w4_ref[3], preferred_element_type=jnp.float32) + bo

    x = q_in + gate_msa * attn_out                                   # gated residual

    # ---- MLP ----------------------------------------------------------------------
    xn = _modulate(_layernorm(x, g_2, b_2), shift_mlp, scale_mlp)
    h1 = jnp.dot(xn, w1_ref[...], preferred_element_type=jnp.float32) + b1_ref[...]
    h1 = _gelu_exact(h1)
    mlp_out = jnp.dot(h1, w2_ref[...], preferred_element_type=jnp.float32) + b2m

    # TODO(synk): output last-dim is 32 (<128) so the final store is lane-masked; per the
    # review this is negligible at these shapes and an in-kernel repack is not worth it.
    o_ref[...] = (x + gate_mlp * mlp_out).astype(o_ref.dtype)


# ---------------------------------------------------------------------------
# Wrapper (single grid step; adaLN + constant masks prepared outside the kernel)
# ---------------------------------------------------------------------------
def _full_spec(shape):
    nd = len(shape)
    return pl.BlockSpec(shape, lambda i, _nd=nd: (0,) * _nd)


@jax.jit
def cross_attn_block(query, key, temp_emb, params):
    # Flatten batch into rows (free reshape outside the kernel).
    q2d = query.reshape(BN, C)
    k2d = key.reshape(BS, C)

    # ---- adaLN path in the wrapper: SiLU -> Linear(T, 8C) -> split + row broadcast ----
    silu = temp_emb * jax.nn.sigmoid(temp_emb)
    mod = (silu @ params["wada"] + params["bada"]).reshape(B, 8, C)
    # chunk order: shift_q, scale_q, shift_kv, scale_kv, gate_msa, shift_mlp, scale_mlp, gate_mlp
    mq = jnp.take(mod, jnp.array([0, 1, 4, 5, 6, 7]), axis=1)                    # (B, 6, C)
    mod_q3 = jnp.broadcast_to(mq[:, :, None, :], (B, 6, N, C)) \
                .transpose(1, 0, 2, 3).reshape(6, BN, C)                         # (6, B*N, C)
    mk = mod[:, 2:4, :]                                                          # (B, 2, C)
    mod_kv3 = jnp.broadcast_to(mk[:, :, None, :], (B, 2, S, C)) \
                 .transpose(1, 0, 2, 3).reshape(2, BS, C)                        # (2, B*S, C)

    # ---- pack per-channel vectors and stack weights on the leading axis ----------------
    pvec = jnp.concatenate(
        [params["g_q"], params["b_q"], params["g_k"], params["b_k"],
         params["g_2"], params["b_2"], params["bo"], params["b2m"]], axis=0)      # (8, C)
    w4 = jnp.stack([params["wq"], params["wk"], params["wv"], params["wo"]], 0)   # (4, C, C)

    # ---- constant masks (hoisted out of the kernel) -------------------------------------
    hmask = (jnp.arange(HBS)[:, None] // BS
             == jnp.arange(C)[None, :] // HD).astype(jnp.float32)                # (H*B*S, C)
    rowb = jnp.arange(BN)[:, None] // N
    colb = (jnp.arange(HBS)[None, :] % BS) // S
    neg = jnp.where(rowb == colb, 0.0, -1e30).astype(jnp.float32)                # (B*N, H*B*S)

    inputs = [q2d, k2d, mod_q3, mod_kv3, pvec, w4,
              params["w1"], params["b1"], params["w2"], hmask, neg]
    in_specs = [_full_spec(x.shape) for x in inputs]

    out2d = pl.pallas_call(
        cross_attn_kernel,
        out_shape=jax.ShapeDtypeStruct((BN, C), jnp.float32),
        grid_spec=pltpu.PrefetchScalarGridSpec(
            num_scalar_prefetch=0,
            grid=(1,),
            in_specs=in_specs,
            out_specs=_full_spec((BN, C)),
        ),
        compiler_params=pltpu.CompilerParams(
            dimension_semantics=("arbitrary",),
        ),
    )(*inputs)
    return out2d.reshape(B, N, C)


# ---------------------------------------------------------------------------
# Pure-JAX reference (same math, no Pallas) for a correctness check
# ---------------------------------------------------------------------------
def reference(query, key, temp_emb, p):
    def ln(x, g, b):
        mu = jnp.mean(x, -1, keepdims=True)
        var = jnp.mean((x - mu) ** 2, -1, keepdims=True)
        return (x - mu) / jnp.sqrt(var + EPS) * g + b

    silu = temp_emb * jax.nn.sigmoid(temp_emb)
    mod = silu @ p["wada"] + p["bada"]                       # (B, 8C)
    chunks = [mod[:, i * C:(i + 1) * C][:, None, :] for i in range(8)]
    (sh_q, sc_q, sh_kv, sc_kv, g_msa, sh_mlp, sc_mlp, g_mlp) = chunks

    qn = ln(query, p["g_q"], p["b_q"]) * (1 + sc_q) + sh_q
    kn = ln(key, p["g_k"], p["b_k"]) * (1 + sc_kv) + sh_kv
    q = (qn @ p["wq"]).reshape(B, N, H, HD).transpose(0, 2, 1, 3)
    k = (kn @ p["wk"]).reshape(B, S, H, HD).transpose(0, 2, 1, 3)
    v = (kn @ p["wv"]).reshape(B, S, H, HD).transpose(0, 2, 1, 3)
    attn = jax.nn.softmax(jnp.einsum("bhnd,bhsd->bhns", q, k) * SCALE, -1)
    out = jnp.einsum("bhns,bhsd->bhnd", attn, v).transpose(0, 2, 1, 3).reshape(B, N, C)
    out = out @ p["wo"] + p["bo"]
    x = query + g_msa * out

    xn = ln(x, p["g_2"], p["b_2"]) * (1 + sc_mlp) + sh_mlp
    h1 = xn @ p["w1"] + p["b1"]
    h1 = 0.5 * h1 * (1.0 + jax.lax.erf(h1 / jnp.sqrt(2.0)))
    x = x + g_mlp * (h1 @ p["w2"] + p["b2m"])
    return x


# ---------------------------------------------------------------------------
# Main
# ---------------------------------------------------------------------------
if __name__ == "__main__":
    root = jax.random.PRNGKey(0)
    keys = jax.random.split(root, 16)

    query = jax.random.normal(keys[0], (B, N, C), jnp.float32)
    key = jax.random.normal(keys[1], (B, S, C), jnp.float32)
    temp_emb = jax.random.normal(keys[2], (B, T), jnp.float32)

    def w(k, shape, scale=0.05):
        return scale * jax.random.normal(k, shape, jnp.float32)

    params = {
        # LayerNorm affine params (elementwise_affine=True)
        "g_q": 1.0 + w(keys[3], (1, C), 0.02), "b_q": w(keys[4], (1, C), 0.02),
        "g_k": 1.0 + w(keys[5], (1, C), 0.02), "b_k": w(keys[6], (1, C), 0.02),
        "g_2": 1.0 + w(keys[7], (1, C), 0.02), "b_2": w(keys[8], (1, C), 0.02),
        # attention projections (qkv_bias=False)
        "wq": w(keys[9], (C, C)), "wk": w(keys[10], (C, C)), "wv": w(keys[11], (C, C)),
        "wo": w(keys[12], (C, C)), "bo": w(keys[12], (1, C), 0.02),
        # MLP
        "w1": w(keys[13], (C, HID)), "b1": w(keys[13], (1, HID), 0.02),
        "w2": w(keys[14], (HID, C)), "b2m": w(keys[14], (1, C), 0.02),
        # adaLN modulation: Linear(T, 8*C)
        "wada": w(keys[15], (T, 8 * C)), "bada": w(keys[15], (1, 8 * C), 0.02),
    }

    out = cross_attn_block(query, key, temp_emb, params)
    out = jax.block_until_ready(out)

    ref = reference(query, key, temp_emb, params)
    assert out.shape == (B, N, C)
    # exact-divide softmax -> only tiny fp ordering differences remain; keep a safe tolerance
    assert jnp.allclose(out, ref, atol=2e-3, rtol=2e-3), (
        f"max abs diff = {jnp.max(jnp.abs(out - ref))}"
    )

    print("KERNEL_OK")
</pallas_src>

<mosaic_0001>
module attributes {stable_mosaic.version = 11 : i64} {
  func.func @cross_attn_kernel(%arg0: i32, %arg1: memref<32x32xf32, #tpu.memory_space<vmem>>, %arg2: memref<16x32xf32, #tpu.memory_space<vmem>>, %arg3: memref<6x32x32xf32, #tpu.memory_space<vmem>>, %arg4: memref<2x16x32xf32, #tpu.memory_space<vmem>>, %arg5: memref<8x32xf32, #tpu.memory_space<vmem>>, %arg6: memref<4x32x32xf32, #tpu.memory_space<vmem>>, %arg7: memref<32x128xf32, #tpu.memory_space<vmem>>, %arg8: memref<1x128xf32, #tpu.memory_space<vmem>>, %arg9: memref<128x32xf32, #tpu.memory_space<vmem>>, %arg10: memref<64x32xf32, #tpu.memory_space<vmem>>, %arg11: memref<32x64xf32, #tpu.memory_space<vmem>>, %arg12: memref<32x32xf32, #tpu.memory_space<vmem>>) attributes {dimension_semantics = [#tpu.dimension_semantics<arbitrary>], iteration_bounds = array<i64: 1>, scalar_prefetch = 0 : i64, scratch_operands = 0 : i64, tpu.core_type = #tpu.core_type<tc>, window_params = [{pipeline_mode = #tpu.pipeline_mode<synchronous>, transform_indices = @transform_0, window_bounds = array<i64: 32, 32>}, {pipeline_mode = #tpu.pipeline_mode<synchronous>, transform_indices = @transform_1, window_bounds = array<i64: 16, 32>}, {pipeline_mode = #tpu.pipeline_mode<synchronous>, transform_indices = @transform_2, window_bounds = array<i64: 6, 32, 32>}, {pipeline_mode = #tpu.pipeline_mode<synchronous>, transform_indices = @transform_3, window_bounds = array<i64: 2, 16, 32>}, {pipeline_mode = #tpu.pipeline_mode<synchronous>, transform_indices = @transform_4, window_bounds = array<i64: 8, 32>}, {pipeline_mode = #tpu.pipeline_mode<synchronous>, transform_indices = @transform_5, window_bounds = array<i64: 4, 32, 32>}, {pipeline_mode = #tpu.pipeline_mode<synchronous>, transform_indices = @transform_6, window_bounds = array<i64: 32, 128>}, {pipeline_mode = #tpu.pipeline_mode<synchronous>, transform_indices = @transform_7, window_bounds = array<i64: 1, 128>}, {pipeline_mode = #tpu.pipeline_mode<synchronous>, transform_indices = @transform_8, window_bounds = array<i64: 128, 32>}, {pipeline_mode = #tpu.pipeline_mode<synchronous>, transform_indices = @transform_9, window_bounds = array<i64: 64, 32>}, {pipeline_mode = #tpu.pipeline_mode<synchronous>, transform_indices = @transform_10, window_bounds = array<i64: 32, 64>}, {pipeline_mode = #tpu.pipeline_mode<synchronous>, transform_indices = @transform_11, window_bounds = array<i64: 32, 32>}]} {
    %c0 = arith.constant 0 : index
    %c0_0 = arith.constant 0 : index
    %0 = vector.load %arg1[%c0, %c0_0] : memref<32x32xf32, #tpu.memory_space<vmem>>, vector<32x32xf32>
    %c0_1 = arith.constant 0 : index
    %c0_2 = arith.constant 0 : index
    %1 = vector.load %arg2[%c0_1, %c0_2] : memref<16x32xf32, #tpu.memory_space<vmem>>, vector<16x32xf32>
    %c0_3 = arith.constant 0 : index
    %c0_4 = arith.constant 0 : index
    %2 = vector.load %arg5[%c0_3, %c0_4] : memref<8x32xf32, #tpu.memory_space<vmem>>, vector<8x32xf32>
    %3 = vector.extract_strided_slice %2 {offsets = [0, 0], sizes = [1, 32], strides = [1, 1]} : vector<8x32xf32> to vector<1x32xf32>
    %4 = vector.extract_strided_slice %2 {offsets = [1, 0], sizes = [1, 32], strides = [1, 1]} : vector<8x32xf32> to vector<1x32xf32>
    %5 = vector.extract_strided_slice %2 {offsets = [2, 0], sizes = [1, 32], strides = [1, 1]} : vector<8x32xf32> to vector<1x32xf32>
    %6 = vector.extract_strided_slice %2 {offsets = [3, 0], sizes = [1, 32], strides = [1, 1]} : vector<8x32xf32> to vector<1x32xf32>
    %7 = vector.extract_strided_slice %2 {offsets = [4, 0], sizes = [1, 32], strides = [1, 1]} : vector<8x32xf32> to vector<1x32xf32>
    %8 = vector.extract_strided_slice %2 {offsets = [5, 0], sizes = [1, 32], strides = [1, 1]} : vector<8x32xf32> to vector<1x32xf32>
    %9 = vector.extract_strided_slice %2 {offsets = [6, 0], sizes = [1, 32], strides = [1, 1]} : vector<8x32xf32> to vector<1x32xf32>
    %10 = vector.extract_strided_slice %2 {offsets = [7, 0], sizes = [1, 32], strides = [1, 1]} : vector<8x32xf32> to vector<1x32xf32>
    %c0_5 = arith.constant 0 : index
    %c0_6 = arith.constant 0 : index
    %c0_7 = arith.constant 0 : index
    %11 = vector.load %arg3[%c0_5, %c0_6, %c0_7] : memref<6x32x32xf32, #tpu.memory_space<vmem>>, vector<1x32x32xf32>
    %12 = vector.shape_cast %11 : vector<1x32x32xf32> to vector<32x32xf32>
    %c1 = arith.constant 1 : index
    %c0_8 = arith.constant 0 : index
    %c0_9 = arith.constant 0 : index
    %13 = vector.load %arg3[%c1, %c0_8, %c0_9] : memref<6x32x32xf32, #tpu.memory_space<vmem>>, vector<1x32x32xf32>
    %14 = vector.shape_cast %13 : vector<1x32x32xf32> to vector<32x32xf32>
    %c2 = arith.constant 2 : index
    %c0_10 = arith.constant 0 : index
    %c0_11 = arith.constant 0 : index
    %15 = vector.load %arg3[%c2, %c0_10, %c0_11] : memref<6x32x32xf32, #tpu.memory_space<vmem>>, vector<1x32x32xf32>
    %16 = vector.shape_cast %15 : vector<1x32x32xf32> to vector<32x32xf32>
    %c3 = arith.constant 3 : index
    %c0_12 = arith.constant 0 : index
    %c0_13 = arith.constant 0 : index
    %17 = vector.load %arg3[%c3, %c0_12, %c0_13] : memref<6x32x32xf32, #tpu.memory_space<vmem>>, vector<1x32x32xf32>
    %18 = vector.shape_cast %17 : vector<1x32x32xf32> to vector<32x32xf32>
    %c4 = arith.constant 4 : index
    %c0_14 = arith.constant 0 : index
    %c0_15 = arith.constant 0 : index
    %19 = vector.load %arg3[%c4, %c0_14, %c0_15] : memref<6x32x32xf32, #tpu.memory_space<vmem>>, vector<1x32x32xf32>
    %20 = vector.shape_cast %19 : vector<1x32x32xf32> to vector<32x32xf32>
    %c5 = arith.constant 5 : index
    %c0_16 = arith.constant 0 : index
    %c0_17 = arith.constant 0 : index
    %21 = vector.load %arg3[%c5, %c0_16, %c0_17] : memref<6x32x32xf32, #tpu.memory_space<vmem>>, vector<1x32x32xf32>
    %22 = vector.shape_cast %21 : vector<1x32x32xf32> to vector<32x32xf32>
    %c0_18 = arith.constant 0 : index
    %c0_19 = arith.constant 0 : index
    %c0_20 = arith.constant 0 : index
    %23 = vector.load %arg4[%c0_18, %c0_19, %c0_20] : memref<2x16x32xf32, #tpu.memory_space<vmem>>, vector<1x16x32xf32>
    %24 = vector.shape_cast %23 : vector<1x16x32xf32> to vector<16x32xf32>
    %c1_21 = arith.constant 1 : index
    %c0_22 = arith.constant 0 : index
    %c0_23 = arith.constant 0 : index
    %25 = vector.load %arg4[%c1_21, %c0_22, %c0_23] : memref<2x16x32xf32, #tpu.memory_space<vmem>>, vector<1x16x32xf32>
    %26 = vector.shape_cast %25 : vector<1x16x32xf32> to vector<16x32xf32>
    %cst = arith.constant dense<0.000000e+00> : vector<32xf32>
    %27 = vector.multi_reduction <add>, %0, %cst [1] : vector<32x32xf32> to vector<32xf32>
    %28 = vector.shape_cast %27 : vector<32xf32> to vector<32x1xf32>
    %cst_24 = arith.constant 3.200000e+01 : f32
    %29 = vector.broadcast %cst_24 : f32 to vector<32x1xf32>
    %30 = arith.divf %28, %29 : vector<32x1xf32>
    %31 = vector.broadcast %30 : vector<32x1xf32> to vector<32x32xf32>
    %32 = arith.subf %0, %31 : vector<32x32xf32>
    %33 = arith.mulf %32, %32 : vector<32x32xf32>
    %cst_25 = arith.constant dense<0.000000e+00> : vector<32xf32>
    %34 = vector.multi_reduction <add>, %33, %cst_25 [1] : vector<32x32xf32> to vector<32xf32>
    %35 = vector.shape_cast %34 : vector<32xf32> to vector<32x1xf32>
    %cst_26 = arith.constant 3.200000e+01 : f32
    %36 = vector.broadcast %cst_26 : f32 to vector<32x1xf32>
    %37 = arith.divf %35, %36 : vector<32x1xf32>
    %38 = vector.broadcast %30 : vector<32x1xf32> to vector<32x32xf32>
    %39 = arith.subf %0, %38 : vector<32x32xf32>
    %cst_27 = arith.constant 9.99999974E-6 : f32
    %40 = vector.broadcast %cst_27 : f32 to vector<32x1xf32>
    %41 = arith.addf %37, %40 : vector<32x1xf32>
    %42 = math.rsqrt %41 : vector<32x1xf32>
    %43 = vector.broadcast %42 : vector<32x1xf32> to vector<32x32xf32>
    %44 = arith.mulf %39, %43 : vector<32x32xf32>
    %45 = vector.broadcast %3 : vector<1x32xf32> to vector<32x32xf32>
    %46 = arith.mulf %44, %45 : vector<32x32xf32>
    %47 = vector.broadcast %4 : vector<1x32xf32> to vector<32x32xf32>
    %48 = arith.addf %46, %47 : vector<32x32xf32>
    %cst_28 = arith.constant 1.000000e+00 : f32
    %49 = vector.broadcast %cst_28 : f32 to vector<32x32xf32>
    %50 = arith.addf %49, %14 : vector<32x32xf32>
    %51 = arith.mulf %48, %50 : vector<32x32xf32>
    %52 = arith.addf %51, %12 : vector<32x32xf32>
    %cst_29 = arith.constant dense<0.000000e+00> : vector<16xf32>
    %53 = vector.multi_reduction <add>, %1, %cst_29 [1] : vector<16x32xf32> to vector<16xf32>
    %54 = vector.shape_cast %53 : vector<16xf32> to vector<16x1xf32>
    %cst_30 = arith.constant 3.200000e+01 : f32
    %55 = vector.broadcast %cst_30 : f32 to vector<16x1xf32>
    %56 = arith.divf %54, %55 : vector<16x1xf32>
    %57 = vector.broadcast %56 : vector<16x1xf32> to vector<16x32xf32>
    %58 = arith.subf %1, %57 : vector<16x32xf32>
    %59 = arith.mulf %58, %58 : vector<16x32xf32>
    %cst_31 = arith.constant dense<0.000000e+00> : vector<16xf32>
    %60 = vector.multi_reduction <add>, %59, %cst_31 [1] : vector<16x32xf32> to vector<16xf32>
    %61 = vector.shape_cast %60 : vector<16xf32> to vector<16x1xf32>
    %cst_32 = arith.constant 3.200000e+01 : f32
    %62 = vector.broadcast %cst_32 : f32 to vector<16x1xf32>
    %63 = arith.divf %61, %62 : vector<16x1xf32>
    %64 = vector.broadcast %56 : vector<16x1xf32> to vector<16x32xf32>
    %65 = arith.subf %1, %64 : vector<16x32xf32>
    %cst_33 = arith.constant 9.99999974E-6 : f32
    %66 = vector.broadcast %cst_33 : f32 to vector<16x1xf32>
    %67 = arith.addf %63, %66 : vector<16x1xf32>
    %68 = math.rsqrt %67 : vector<16x1xf32>
    %69 = vector.broadcast %68 : vector<16x1xf32> to vector<16x32xf32>
    %70 = arith.mulf %65, %69 : vector<16x32xf32>
    %71 = vector.broadcast %5 : vector<1x32xf32> to vector<16x32xf32>
    %72 = arith.mulf %70, %71 : vector<16x32xf32>
    %73 = vector.broadcast %6 : vector<1x32xf32> to vector<16x32xf32>
    %74 = arith.addf %72, %73 : vector<16x32xf32>
    %cst_34 = arith.constant 1.000000e+00 : f32
    %75 = vector.broadcast %cst_34 : f32 to vector<16x32xf32>
    %76 = arith.addf %75, %26 : vector<16x32xf32>
    %77 = arith.mulf %74, %76 : vector<16x32xf32>
    %78 = arith.addf %77, %24 : vector<16x32xf32>
    %c0_35 = arith.constant 0 : index
    %c0_36 = arith.constant 0 : index
    %c0_37 = arith.constant 0 : index
    %79 = vector.load %arg6[%c0_35, %c0_36, %c0_37] : memref<4x32x32xf32, #tpu.memory_space<vmem>>, vector<1x32x32xf32>
    %80 = vector.shape_cast %79 : vector<1x32x32xf32> to vector<32x32xf32>
    %cst_38 = arith.constant dense<0.000000e+00> : vector<32x32xf32>
    %81 = tpu.matmul %52, %80, %cst_38 {dimension_numbers = #tpu.dot_dimension_numbers<[1], [0], [0], [1], [0, 0, 1, 1], [], []>} : vector<32x32xf32>, vector<32x32xf32>, vector<32x32xf32> -> vector<32x32xf32>
    %c1_39 = arith.constant 1 : index
    %c0_40 = arith.constant 0 : index
    %c0_41 = arith.constant 0 : index
    %82 = vector.load %arg6[%c1_39, %c0_40, %c0_41] : memref<4x32x32xf32, #tpu.memory_space<vmem>>, vector<1x32x32xf32>
    %83 = vector.shape_cast %82 : vector<1x32x32xf32> to vector<32x32xf32>
    %cst_42 = arith.constant dense<0.000000e+00> : vector<16x32xf32>
    %84 = tpu.matmul %78, %83, %cst_42 {dimension_numbers = #tpu.dot_dimension_numbers<[1], [0], [0], [1], [0, 0, 1, 1], [], []>} : vector<16x32xf32>, vector<32x32xf32>, vector<16x32xf32> -> vector<16x32xf32>
    %c2_43 = arith.constant 2 : index
    %c0_44 = arith.constant 0 : index
    %c0_45 = arith.constant 0 : index
    %85 = vector.load %arg6[%c2_43, %c0_44, %c0_45] : memref<4x32x32xf32, #tpu.memory_space<vmem>>, vector<1x32x32xf32>
    %86 = vector.shape_cast %85 : vector<1x32x32xf32> to vector<32x32xf32>
    %cst_46 = arith.constant dense<0.000000e+00> : vector<16x32xf32>
    %87 = tpu.matmul %78, %86, %cst_46 {dimension_numbers = #tpu.dot_dimension_numbers<[1], [0], [0], [1], [0, 0, 1, 1], [], []>} : vector<16x32xf32>, vector<32x32xf32>, vector<16x32xf32> -> vector<16x32xf32>
    %c0_47 = arith.constant 0 : index
    %c0_48 = arith.constant 0 : index
    %88 = vector.load %arg10[%c0_47, %c0_48] : memref<64x32xf32, #tpu.memory_space<vmem>>, vector<64x32xf32>
    %89 = tpu.concatenate %84, %84, %84, %84 in 0 : vector<16x32xf32>, vector<16x32xf32>, vector<16x32xf32>, vector<16x32xf32> -> vector<64x32xf32>
    %90 = arith.mulf %89, %88 : vector<64x32xf32>
    %91 = tpu.concatenate %87, %87, %87, %87 in 0 : vector<16x32xf32>, vector<16x32xf32>, vector<16x32xf32>, vector<16x32xf32> -> vector<64x32xf32>
    %92 = arith.mulf %91, %88 : vector<64x32xf32>
    %cst_49 = arith.constant dense<0.000000e+00> : vector<32x64xf32>
    %93 = tpu.matmul %81, %90, %cst_49 {dimension_numbers = #tpu.dot_dimension_numbers<[1], [1], [0], [0], [0, 0, 1, 0], [], []>} : vector<32x32xf32>, vector<64x32xf32>, vector<32x64xf32> -> vector<32x64xf32>
    %cst_50 = arith.constant 0.353553385 : f32
    %94 = vector.broadcast %cst_50 : f32 to vector<32x64xf32>
    %95 = arith.mulf %93, %94 : vector<32x64xf32>
    %c0_51 = arith.constant 0 : index
    %c0_52 = arith.constant 0 : index
    %96 = vector.load %arg11[%c0_51, %c0_52] : memref<32x64xf32, #tpu.memory_space<vmem>>, vector<32x64xf32>
    %97 = arith.addf %95, %96 : vector<32x64xf32>
    %cst_53 = arith.constant dense<0xFF800000> : vector<32xf32>
    %98 = vector.multi_reduction <maximumf>, %97, %cst_53 [1] : vector<32x64xf32> to vector<32xf32>
    %99 = vector.shape_cast %98 : vector<32xf32> to vector<32x1xf32>
    %100 = vector.broadcast %99 : vector<32x1xf32> to vector<32x64xf32>
    %101 = arith.subf %97, %100 : vector<32x64xf32>
    %102 = math.exp %101 : vector<32x64xf32>
    %cst_54 = arith.constant dense<0.000000e+00> : vector<32x32xf32>
    %103 = tpu.matmul %102, %92, %cst_54 {dimension_numbers = #tpu.dot_dimension_numbers<[1], [0], [0], [1], [0, 0, 1, 1], [], []>} : vector<32x64xf32>, vector<64x32xf32>, vector<32x32xf32> -> vector<32x32xf32>
    %cst_55 = arith.constant dense<0.000000e+00> : vector<32x32xf32>
    %104 = tpu.matmul %102, %88, %cst_55 {dimension_numbers = #tpu.dot_dimension_numbers<[1], [0], [0], [1], [0, 0, 1, 1], [], []>} : vector<32x64xf32>, vector<64x32xf32>, vector<32x32xf32> -> vector<32x32xf32>
    %105 = arith.divf %103, %104 : vector<32x32xf32>
    %c3_56 = arith.constant 3 : index
    %c0_57 = arith.constant 0 : index
    %c0_58 = arith.constant 0 : index
    %106 = vector.load %arg6[%c3_56, %c0_57, %c0_58] : memref<4x32x32xf32, #tpu.memory_space<vmem>>, vector<1x32x32xf32>
    %107 = vector.shape_cast %106 : vector<1x32x32xf32> to vector<32x32xf32>
    %cst_59 = arith.constant dense<0.000000e+00> : vector<32x32xf32>
    %108 = tpu.matmul %105, %107, %cst_59 {dimension_numbers = #tpu.dot_dimension_numbers<[1], [0], [0], [1], [0, 0, 1, 1], [], []>} : vector<32x32xf32>, vector<32x32xf32>, vector<32x32xf32> -> vector<32x32xf32>
    %109 = vector.broadcast %9 : vector<1x32xf32> to vector<32x32xf32>
    %110 = arith.addf %108, %109 : vector<32x32xf32>
    %111 = arith.mulf %16, %110 : vector<32x32xf32>
    %112 = arith.addf %0, %111 : vector<32x32xf32>
    %cst_60 = arith.constant dense<0.000000e+00> : vector<32xf32>
    %113 = vector.multi_reduction <add>, %112, %cst_60 [1] : vector<32x32xf32> to vector<32xf32>
    %114 = vector.shape_cast %113 : vector<32xf32> to vector<32x1xf32>
    %cst_61 = arith.constant 3.200000e+01 : f32
    %115 = vector.broadcast %cst_61 : f32 to vector<32x1xf32>
    %116 = arith.divf %114, %115 : vector<32x1xf32>
    %117 = vector.broadcast %116 : vector<32x1xf32> to vector<32x32xf32>
    %118 = arith.subf %112, %117 : vector<32x32xf32>
    %119 = arith.mulf %118, %118 : vector<32x32xf32>
    %cst_62 = arith.constant dense<0.000000e+00> : vector<32xf32>
    %120 = vector.multi_reduction <add>, %119, %cst_62 [1] : vector<32x32xf32> to vector<32xf32>
    %121 = vector.shape_cast %120 : vector<32xf32> to vector<32x1xf32>
    %cst_63 = arith.constant 3.200000e+01 : f32
    %122 = vector.broadcast %cst_63 : f32 to vector<32x1xf32>
    %123 = arith.divf %121, %122 : vector<32x1xf32>
    %124 = vector.broadcast %116 : vector<32x1xf32> to vector<32x32xf32>
    %125 = arith.subf %112, %124 : vector<32x32xf32>
    %cst_64 = arith.constant 9.99999974E-6 : f32
    %126 = vector.broadcast %cst_64 : f32 to vector<32x1xf32>
    %127 = arith.addf %123, %126 : vector<32x1xf32>
    %128 = math.rsqrt %127 : vector<32x1xf32>
    %129 = vector.broadcast %128 : vector<32x1xf32> to vector<32x32xf32>
    %130 = arith.mulf %125, %129 : vector<32x32xf32>
    %131 = vector.broadcast %7 : vector<1x32xf32> to vector<32x32xf32>
    %132 = arith.mulf %130, %131 : vector<32x32xf32>
    %133 = vector.broadcast %8 : vector<1x32xf32> to vector<32x32xf32>
    %134 = arith.addf %132, %133 : vector<32x32xf32>
    %cst_65 = arith.constant 1.000000e+00 : f32
    %135 = vector.broadcast %cst_65 : f32 to vector<32x32xf32>
    %136 = arith.addf %135, %20 : vector<32x32xf32>
    %137 = arith.mulf %134, %136 : vector<32x32xf32>
    %138 = arith.addf %137, %18 : vector<32x32xf32>
    %c0_66 = arith.constant 0 : index
    %c0_67 = arith.constant 0 : index
    %139 = vector.load %arg7[%c0_66, %c0_67] : memref<32x128xf32, #tpu.memory_space<vmem>>, vector<32x128xf32>
    %cst_68 = arith.constant dense<0.000000e+00> : vector<32x128xf32>
    %140 = tpu.matmul %138, %139, %cst_68 {dimension_numbers = #tpu.dot_dimension_numbers<[1], [0], [0], [1], [0, 0, 1, 1], [], []>} : vector<32x32xf32>, vector<32x128xf32>, vector<32x128xf32> -> vector<32x128xf32>
    %c0_69 = arith.constant 0 : index
    %c0_70 = arith.constant 0 : index
    %141 = vector.load %arg8[%c0_69, %c0_70] : memref<1x128xf32, #tpu.memory_space<vmem>>, vector<1x128xf32>
    %142 = vector.broadcast %141 : vector<1x128xf32> to vector<32x128xf32>
    %143 = arith.addf %140, %142 : vector<32x128xf32>
    %cst_71 = arith.constant 5.000000e-01 : f32
    %144 = vector.broadcast %cst_71 : f32 to vector<32x128xf32>
    %145 = arith.mulf %144, %143 : vector<32x128xf32>
    %cst_72 = arith.constant 2.000000e+00 : f32
    %146 = math.sqrt %cst_72 : f32
    %147 = vector.broadcast %146 : f32 to vector<32x128xf32>
    %148 = arith.divf %143, %147 : vector<32x128xf32>
    %149 = math.erf %148 : vector<32x128xf32>
    %cst_73 = arith.constant 1.000000e+00 : f32
    %150 = vector.broadcast %cst_73 : f32 to vector<32x128xf32>
    %151 = arith.addf %150, %149 : vector<32x128xf32>
    %152 = arith.mulf %145, %151 : vector<32x128xf32>
    %c0_74 = arith.constant 0 : index
    %c0_75 = arith.constant 0 : index
    %153 = vector.load %arg9[%c0_74, %c0_75] : memref<128x32xf32, #tpu.memory_space<vmem>>, vector<128x32xf32>
    %cst_76 = arith.constant dense<0.000000e+00> : vector<32x32xf32>
    %154 = tpu.matmul %152, %153, %cst_76 {dimension_numbers = #tpu.dot_dimension_numbers<[1], [0], [0], [1], [0, 0, 1, 1], [], []>} : vector<32x128xf32>, vector<128x32xf32>, vector<32x32xf32> -> vector<32x32xf32>
    %155 = vector.broadcast %10 : vector<1x32xf32> to vector<32x32xf32>
    %156 = arith.addf %154, %155 : vector<32x32xf32>
    %157 = arith.mulf %22, %156 : vector<32x32xf32>
    %158 = arith.addf %112, %157 : vector<32x32xf32>
    %c0_77 = arith.constant 0 : index
    %c0_78 = arith.constant 0 : index
    %159 = vector.load %arg12[%c0_77, %c0_78] : memref<32x32xf32, #tpu.memory_space<vmem>>, vector<32x32xf32>
    tpu.vector_store %arg12[%c0_77, %c0_78], %158 {strides = array<i32>} : memref<32x32xf32, #tpu.memory_space<vmem>>, vector<32x32xf32>,
    return
  }
  func.func @transform_0(%arg0: i32) -> (i32, i32) {
    %c0_i32 = arith.constant 0 : i32
    %c0_i32_0 = arith.constant 0 : i32
    %c0_i32_1 = arith.constant 0 : i32
    return %c0_i32, %c0_i32_0 : i32, i32
  }
  func.func @transform_1(%arg0: i32) -> (i32, i32) {
    %c0_i32 = arith.constant 0 : i32
    %c0_i32_0 = arith.constant 0 : i32
    %c0_i32_1 = arith.constant 0 : i32
    return %c0_i32, %c0_i32_0 : i32, i32
  }
  func.func @transform_2(%arg0: i32) -> (i32, i32, i32) {
    %c0_i32 = arith.constant 0 : i32
    %c0_i32_0 = arith.constant 0 : i32
    %c0_i32_1 = arith.constant 0 : i32
    %c0_i32_2 = arith.constant 0 : i32
    return %c0_i32, %c0_i32_0, %c0_i32_1 : i32, i32, i32
  }
  func.func @transform_3(%arg0: i32) -> (i32, i32, i32) {
    %c0_i32 = arith.constant 0 : i32
    %c0_i32_0 = arith.constant 0 : i32
    %c0_i32_1 = arith.constant 0 : i32
    %c0_i32_2 = arith.constant 0 : i32
    return %c0_i32, %c0_i32_0, %c0_i32_1 : i32, i32, i32
  }
  func.func @transform_4(%arg0: i32) -> (i32, i32) {
    %c0_i32 = arith.constant 0 : i32
    %c0_i32_0 = arith.constant 0 : i32
    %c0_i32_1 = arith.constant 0 : i32
    return %c0_i32, %c0_i32_0 : i32, i32
  }
  func.func @transform_5(%arg0: i32) -> (i32, i32, i32) {
    %c0_i32 = arith.constant 0 : i32
    %c0_i32_0 = arith.constant 0 : i32
    %c0_i32_1 = arith.constant 0 : i32
    %c0_i32_2 = arith.constant 0 : i32
    return %c0_i32, %c0_i32_0, %c0_i32_1 : i32, i32, i32
  }
  func.func @transform_6(%arg0: i32) -> (i32, i32) {
    %c0_i32 = arith.constant 0 : i32
    %c0_i32_0 = arith.constant 0 : i32
    %c0_i32_1 = arith.constant 0 : i32
    return %c0_i32, %c0_i32_0 : i32, i32
  }
  func.func @transform_7(%arg0: i32) -> (i32, i32) {
    %c0_i32 = arith.constant 0 : i32
    %c0_i32_0 = arith.constant 0 : i32
    %c0_i32_1 = arith.constant 0 : i32
    return %c0_i32, %c0_i32_0 : i32, i32
  }
  func.func @transform_8(%arg0: i32) -> (i32, i32) {
    %c0_i32 = arith.constant 0 : i32
    %c0_i32_0 = arith.constant 0 : i32
    %c0_i32_1 = arith.constant 0 : i32
    return %c0_i32, %c0_i32_0 : i32, i32
  }
  func.func @transform_9(%arg0: i32) -> (i32, i32) {
    %c0_i32 = arith.constant 0 : i32
    %c0_i32_0 = arith.constant 0 : i32
    %c0_i32_1 = arith.constant 0 : i32
    return %c0_i32, %c0_i32_0 : i32, i32
  }
  func.func @transform_10(%arg0: i32) -> (i32, i32) {
    %c0_i32 = arith.constant 0 : i32
    %c0_i32_0 = arith.constant 0 : i32
    %c0_i32_1 = arith.constant 0 : i32
    return %c0_i32, %c0_i32_0 : i32, i32
  }
  func.func @transform_11(%arg0: i32) -> (i32, i32) {
    %c0_i32 = arith.constant 0 : i32
    %c0_i32_0 = arith.constant 0 : i32
    %c0_i32_1 = arith.constant 0 : i32
    return %c0_i32, %c0_i32_0 : i32, i32
  }
}

</mosaic_0001>

<llo_original>
// kernel: cross_attn_block.1
$region0: #{cross_attn_block.1}
  #allocation0 [shape = 'u32[]', space=smem, size = 0x4, offset = 0x4, fixed_abs, tag = 'smem constant byte address 0x4 - core index']
  #allocation1 [shape = 'u32[144,128]{1,0:T(1,128)}', space=vmem, size = 0x12000, scoped, tag = 'internal scratch']
  %s0 = inlined_call_operand.vmem [shape: f32[32,32], index: 0, kind: input, shape index: {}]
  %s1 = inlined_call_operand.vmem [shape: f32[16,32], index: 1, kind: input, shape index: {}]
  %s2 = inlined_call_operand.vmem [shape: f32[6,32,32], index: 2, kind: input, shape index: {}]
  %s3 = inlined_call_operand.vmem [shape: f32[2,16,32], index: 3, kind: input, shape index: {}]
  %s4 = inlined_call_operand.vmem [shape: f32[8,32], index: 4, kind: input, shape index: {}]
  %s5 = inlined_call_operand.vmem [shape: f32[4,32,32], index: 5, kind: input, shape index: {}]
  %s6 = inlined_call_operand.vmem [shape: f32[32,128], index: 6, kind: input, shape index: {}]
  %s7 = inlined_call_operand.vmem [shape: f32[1,128], index: 7, kind: input, shape index: {}]
  %s8 = inlined_call_operand.vmem [shape: f32[128,32], index: 8, kind: input, shape index: {}]
  %s9 = inlined_call_operand.vmem [shape: f32[64,32], index: 9, kind: input, shape index: {}]
  %s10 = inlined_call_operand.vmem [shape: f32[32,64], index: 10, kind: input, shape index: {}]
  %s11 = inlined_call_operand.hbm [shape: f32[32,32], index: 11, kind: output, shape index: {}]
  %s12 = sld [smem:[#allocation0]]
  $region54: #{cross_attn_block.1} parent=0
    _
  %s14 = ssub.s32 1, %s12
  %s15 = scalar_select 0, %s14, %s12
  $region1: #{cross_attn_block.1} parent=0
    #allocation2 [shape = 'u8[16384]{0}', space=vmem, size = 0x4000, scoped, tag = 'output window, operand 0, single buffered']
    #allocation3 [shape = 's32[1]{0}', space=sflag, size = 0x4, scoped, tag = 'scoped memory for cross_attn_block.1']
    %16 = vsyncpa [#allocation3], 0
    // Predicated region
    $region2: #{cross_attn_block.1} parent=1 // pred_check
      _
    $region3: #{cross_attn_block.1} parent=1 // pred_check_branch
      %18 = sbr.rel (0) target = $region5
    $region4: #{cross_attn_block.1} parent=1 // pred_region
      _
    $region5: #{cross_attn_block.1} parent=1 // pred_fallthru
      _
    // Predicated region
    $region6: #{cross_attn_block.1} parent=1 // pred_check
      _
    $region7: #{cross_attn_block.1} parent=1 // pred_check_branch
      %20 = sbr.rel (0) target = $region9
    $region8: #{cross_attn_block.1} parent=1 // pred_region
      _
    $region9: #{cross_attn_block.1} parent=1 // pred_fallthru
      _
    // Predicated region
    $region10: #{cross_attn_block.1} parent=1 // pred_check
      _
    $region11: #{cross_attn_block.1} parent=1 // pred_check_branch
      %22 = sbr.rel (0) target = $region13
    $region12: #{cross_attn_block.1} parent=1 // pred_region
      _
    $region13: #{cross_attn_block.1} parent=1 // pred_fallthru
      _
    // Predicated region
    $region14: #{cross_attn_block.1} parent=1 // pred_check
      _
    $region15: #{cross_attn_block.1} parent=1 // pred_check_branch
      %24 = sbr.rel (0) target = $region17
    $region16: #{cross_attn_block.1} parent=1 // pred_region
      _
    $region17: #{cross_attn_block.1} parent=1 // pred_fallthru
      _
    // Predicated region
    $region18: #{cross_attn_block.1} parent=1 // pred_check
      _
    $region19: #{cross_attn_block.1} parent=1 // pred_check_branch
      %26 = sbr.rel (0) target = $region21
    $region20: #{cross_attn_block.1} parent=1 // pred_region
      _
    $region21: #{cross_attn_block.1} parent=1 // pred_fallthru
      _
    // Predicated region
    $region22: #{cross_attn_block.1} parent=1 // pred_check
      _
    $region23: #{cross_attn_block.1} parent=1 // pred_check_branch
      %28 = sbr.rel (0) target = $region25
    $region24: #{cross_attn_block.1} parent=1 // pred_region
      _
    $region25: #{cross_attn_block.1} parent=1 // pred_fallthru
      _
    // Predicated region
    $region26: #{cross_attn_block.1} parent=1 // pred_check
      _
    $region27: #{cross_attn_block.1} parent=1 // pred_check_branch
      %30 = sbr.rel (0) target = $region29
    $region28: #{cross_attn_block.1} parent=1 // pred_region
      _
    $region29: #{cross_attn_block.1} parent=1 // pred_fallthru
      _
    // Predicated region
    $region30: #{cross_attn_block.1} parent=1 // pred_check
      _
    $region31: #{cross_attn_block.1} parent=1 // pred_check_branch
      %32 = sbr.rel (0) target = $region33
    $region32: #{cross_attn_block.1} parent=1 // pred_region
      _
    $region33: #{cross_attn_block.1} parent=1 // pred_fallthru
      _
    // Predicated region
    $region34: #{cross_attn_block.1} parent=1 // pred_check
      _
    $region35: #{cross_attn_block.1} parent=1 // pred_check_branch
      %34 = sbr.rel (0) target = $region37
    $region36: #{cross_attn_block.1} parent=1 // pred_region
      _
    $region37: #{cross_attn_block.1} parent=1 // pred_fallthru
      _
    // Predicated region
    $region38: #{cross_attn_block.1} parent=1 // pred_check
      _
    $region39: #{cross_attn_block.1} parent=1 // pred_check_branch
      %36 = sbr.rel (0) target = $region41
    $region40: #{cross_attn_block.1} parent=1 // pred_region
      _
    $region41: #{cross_attn_block.1} parent=1 // pred_fallthru
      _
    // Predicated region
    $region42: #{cross_attn_block.1} parent=1 // pred_check
      _
    $region43: #{cross_attn_block.1} parent=1 // pred_check_branch
      %38 = sbr.rel (0) target = $region45
    $region44: #{cross_attn_block.1} parent=1 // pred_region
      _
    $region45: #{cross_attn_block.1} parent=1 // pred_fallthru
      _
    %v39 = vld [vmem:[%s0] sm:$0xff]
    %v40 = vld [vmem:[%s0 + $0x8] sm:$0xff]
    %v41 = vld [vmem:[%s0 + $0x10] sm:$0xff]
    %v42 = vld [vmem:[%s0 + $0x18] sm:$0xff]
    %v43 = vld [vmem:[%s1] sm:$0xff]
    %v44 = vld [vmem:[%s1 + $0x8] sm:$0xff]
    %v45 = vld [vmem:[%s4] sm:$0xff]
    %v46 = vld [vmem:[%s2] sm:$0xff]
    %v47 = vld [vmem:[%s2 + $0x8] sm:$0xff]
    %v48 = vld [vmem:[%s2 + $0x10] sm:$0xff]
    %v49 = vld [vmem:[%s2 + $0x18] sm:$0xff]
    %s50 = scalar_lea.vmem %s2, 32
    %v51 = vld [vmem:[%s50] sm:$0xff]
    %v52 = vld [vmem:[%s50 + $0x8] sm:$0xff]
    %v53 = vld [vmem:[%s50 + $0x10] sm:$0xff]
    %v54 = vld [vmem:[%s50 + $0x18] sm:$0xff]
    %s55 = scalar_lea.vmem %s2, 64
    %v56 = vld [vmem:[%s55] sm:$0xff]
    %v57 = vld [vmem:[%s55 + $0x8] sm:$0xff]
    %v58 = vld [vmem:[%s55 + $0x10] sm:$0xff]
    %v59 = vld [vmem:[%s55 + $0x18] sm:$0xff]
    %s60 = scalar_lea.vmem %s2, 96
    %v61 = vld [vmem:[%s60] sm:$0xff]
    %v62 = vld [vmem:[%s60 + $0x8] sm:$0xff]
    %v63 = vld [vmem:[%s60 + $0x10] sm:$0xff]
    %v64 = vld [vmem:[%s60 + $0x18] sm:$0xff]
    %s65 = scalar_lea.vmem %s2, 128
    %v66 = vld [vmem:[%s65] sm:$0xff]
    %v67 = vld [vmem:[%s65 + $0x8] sm:$0xff]
    %v68 = vld [vmem:[%s65 + $0x10] sm:$0xff]
    %v69 = vld [vmem:[%s65 + $0x18] sm:$0xff]
    %s70 = scalar_lea.vmem %s2, 160
    %v71 = vld [vmem:[%s70] sm:$0xff]
    %v72 = vld [vmem:[%s70 + $0x8] sm:$0xff]
    %v73 = vld [vmem:[%s70 + $0x10] sm:$0xff]
    %v74 = vld [vmem:[%s70 + $0x18] sm:$0xff]
    %v75 = vld [vmem:[%s3] sm:$0xff]
    %v76 = vld [vmem:[%s3 + $0x8] sm:$0xff]
    %s77 = scalar_lea.vmem %s3, 16
    %v78 = vld [vmem:[%s77] sm:$0xff]
    %v79 = vld [vmem:[%s77 + $0x8] sm:$0xff]
    %vm80 = vcmask 261120
    %v81 = vsel %vm80, %v39, 0.0
    %82 = vadd.xlane.f32.xlu0 %v81
    %v83 = vpop.xlane.xlu0 %82
    %v84 = vsel %vm80, %v40, 0.0
    %85 = vadd.xlane.f32.xlu0 %v84
    %v86 = vpop.xlane.xlu0 %85
    %v87 = vsel %vm80, %v41, 0.0
    %88 = vadd.xlane.f32.xlu0 %v87
    %v89 = vpop.xlane.xlu0 %88
    %v90 = vsel %vm80, %v42, 0.0
    %91 = vadd.xlane.f32.xlu0 %v90
    %v92 = vpop.xlane.xlu0 %91
    %v93 = vrcp.pop 32.0
    %v94 = vmul.f32 %v83, %v93
    %v95 = vmul.f32 %v86, %v93
    %v96 = vmul.f32 %v89, %v93
    %v97 = vmul.f32 %v92, %v93
    %v98 = vsub.f32 %v39, %v94
    %v99 = vsub.f32 %v40, %v95
    %v100 = vsub.f32 %v41, %v96
    %v101 = vsub.f32 %v42, %v97
    %v102 = vmul.f32 %v98, %v98
    %v103 = vmul.f32 %v99, %v99
    %v104 = vmul.f32 %v100, %v100
    %v105 = vmul.f32 %v101, %v101
    %v106 = vsel %vm80, %v102, 0.0
    %107 = vadd.xlane.f32.xlu0 %v106
    %v108 = vpop.xlane.xlu0 %107
    %v109 = vsel %vm80, %v103, 0.0
    %110 = vadd.xlane.f32.xlu0 %v109
    %v111 = vpop.xlane.xlu0 %110
    %v112 = vsel %vm80, %v104, 0.0
    %113 = vadd.xlane.f32.xlu0 %v112
    %v114 = vpop.xlane.xlu0 %113
    %v115 = vsel %vm80, %v105, 0.0
    %116 = vadd.xlane.f32.xlu0 %v115
    %v117 = vpop.xlane.xlu0 %116
    %v118 = vmul.f32 %v108, %v93
    %v119 = vmul.f32 %v111, %v93
    %v120 = vmul.f32 %v114, %v93
    %v121 = vmul.f32 %v117, %v93
    %v122 = vadd.f32 %v118, 1e-05
    %v123 = vadd.f32 %v119, 1e-05
    %v124 = vadd.f32 %v120, 1e-05
    %v125 = vadd.f32 %v121, 1e-05
    %v126 = vrsqrt.pop %v122
    %v127 = vrsqrt.pop %v123
    %v128 = vrsqrt.pop %v124
    %v129 = vrsqrt.pop %v125
    %v130 = vmul.f32 %v98, %v126
    %v131 = vmul.f32 %v99, %v127
    %v132 = vmul.f32 %v100, %v128
    %v133 = vmul.f32 %v101, %v129
    %v134 = vlaneseq
    %v135 = vshrl.u32 %v134, 7
    %v136 = vsub.s32 0, %v135
    %v137 = vrot.slane %v45, %v136
    %v138 = vmul.f32 %v130, %v137
    %v139 = vmul.f32 %v131, %v137
    %v140 = vmul.f32 %v132, %v137
    %v141 = vmul.f32 %v133, %v137
    %v142 = vlaneseq
    %v143 = vshrl.u32 %v142, 7
    %v144 = vsub.s32 1, %v143
    %v145 = vrot.slane %v45, %v144
    %v146 = vadd.f32 %v138, %v145
    %v147 = vadd.f32 %v139, %v145
    %v148 = vadd.f32 %v140, %v145
    %v149 = vadd.f32 %v141, %v145
    %v150 = vadd.f32 %v51, 1.0
    %v151 = vadd.f32 %v52, 1.0
    %v152 = vadd.f32 %v53, 1.0
    %v153 = vadd.f32 %v54, 1.0
    %v154 = vmul.f32 %v146, %v150
    %v155 = vmul.f32 %v147, %v151
    %v156 = vmul.f32 %v148, %v152
    %v157 = vmul.f32 %v149, %v153
    %v158 = vadd.f32 %v154, %v46
    %v159 = vadd.f32 %v155, %v47
    %v160 = vadd.f32 %v156, %v48
    %v161 = vadd.f32 %v157, %v49
    %v162 = vsel %vm80, %v43, 0.0
    %163 = vadd.xlane.f32.xlu0 %v162
    %v164 = vpop.xlane.xlu0 %163
    %v165 = vsel %vm80, %v44, 0.0
    %166 = vadd.xlane.f32.xlu0 %v165
    %v167 = vpop.xlane.xlu0 %166
    %v168 = vmul.f32 %v164, %v93
    %v169 = vmul.f32 %v167, %v93
    %v170 = vsub.f32 %v43, %v168
    %v171 = vsub.f32 %v44, %v169
    %v172 = vmul.f32 %v170, %v170
    %v173 = vmul.f32 %v171, %v171
    %v174 = vsel %vm80, %v172, 0.0
    %175 = vadd.xlane.f32.xlu0 %v174
    %v176 = vpop.xlane.xlu0 %175
    %v177 = vsel %vm80, %v173, 0.0
    %178 = vadd.xlane.f32.xlu0 %v177
    %v179 = vpop.xlane.xlu0 %178
    %v180 = vmul.f32 %v176, %v93
    %v181 = vmul.f32 %v179, %v93
    %v182 = vadd.f32 %v180, 1e-05
    %v183 = vadd.f32 %v181, 1e-05
    %v184 = vrsqrt.pop %v182
    %v185 = vrsqrt.pop %v183
    %v186 = vmul.f32 %v170, %v184
    %v187 = vmul.f32 %v171, %v185
    %v188 = vlaneseq
    %v189 = vshrl.u32 %v188, 7
    %v190 = vsub.s32 2, %v189
    %v191 = vrot.slane %v45, %v190
    %v192 = vmul.f32 %v186, %v191
    %v193 = vmul.f32 %v187, %v191
    %v194 = vlaneseq
    %v195 = vshrl.u32 %v194, 7
    %v196 = vsub.s32 3, %v195
    %v197 = vrot.slane %v45, %v196
    %v198 = vadd.f32 %v192, %v197
    %v199 = vadd.f32 %v193, %v197
    %v200 = vadd.f32 %v78, 1.0
    %v201 = vadd.f32 %v79, 1.0
    %v202 = vmul.f32 %v198, %v200
    %v203 = vmul.f32 %v199, %v201
    %v204 = vadd.f32 %v202, %v75
    %v205 = vadd.f32 %v203, %v76
    %v206 = vld [vmem:[%s5] sm:$0xff]
    %v207 = vld [vmem:[%s5 + $0x8] sm:$0xff]
    %v208 = vld [vmem:[%s5 + $0x10] sm:$0xff]
    %v209 = vld [vmem:[%s5 + $0x18] sm:$0xff]
    %v211 = vsel %vm80, %v158, 0
    %v214 = vsel %vm80, %v159, 0
    %v217 = vsel %vm80, %v160, 0
    %v220 = vsel %vm80, %v161, 0
    %222 = vmatprep.subr.mxu0 0.0
    %223 = vmatpush1.msra.mxu0 0.0
    %224 = vmatprep.subr.mxu0 0.0
    %225 = vmatpush1.msra.mxu0 0.0
    %226 = vmatprep.subr.mxu0 0.0
    %227 = vmatpush1.msra.mxu0 0.0
    %228 = vmatprep.subr.mxu0 0.0
    %229 = vmatpush1.msra.mxu0 0.0
    %230 = vmatprep.subr.mxu0 0.0
    %231 = vmatpush1.msra.mxu0 0.0
    %232 = vmatprep.subr.mxu0 0.0
    %233 = vmatpush1.msra.mxu0 0.0
    %234 = vmatprep.subr.mxu0 0.0
    %235 = vmatpush1.msra.mxu0 0.0
    %236 = vmatprep.subr.mxu0 0.0
    %237 = vmatpush1.msra.mxu0 0.0
    %238 = vmatprep.subr.mxu0 0.0
    %239 = vmatpush1.msra.mxu0 0.0
    %240 = vmatprep.subr.mxu0 0.0
    %241 = vmatpush1.msra.mxu0 0.0
    %242 = vmatprep.subr.mxu0 0.0
    %243 = vmatpush1.msra.mxu0 0.0
    %244 = vmatprep.subr.mxu0 0.0
    %245 = vmatpush1.msra.mxu0 0.0
    %246 = vmatprep.subr.mxu0 0.0
    %247 = vmatpush1.msra.mxu0 %v209
    %248 = vmatprep.subr.mxu0 0.0
    %249 = vmatpush1.msra.mxu0 %v208
    %250 = vmatprep.subr.mxu0 0.0
    %251 = vmatpush1.msra.mxu0 %v207
    %252 = vmatprep.subr.mxu0 0.0
    %253 = vmatpush1.msra.mxu0 %v206
    %254 = vmatprep.subr.mxu0 0.0
    %255 = vmatpush2.msra.mxu0 0.0
    %256 = vmatprep.subr.mxu0 0.0
    %257 = vmatpush2.msra.mxu0 0.0
    %258 = vmatprep.subr.mxu0 0.0
    %259 = vmatpush2.msra.mxu0 0.0
    %260 = vmatprep.subr.mxu0 0.0
    %261 = vmatpush2.msra.mxu0 0.0
    %262 = vmatprep.subr.mxu0 0.0
    %263 = vmatpush2.msra.mxu0 0.0
    %264 = vmatprep.subr.mxu0 0.0
    %265 = vmatpush2.msra.mxu0 0.0
    %266 = vmatprep.subr.mxu0 0.0
    %267 = vmatpush2.msra.mxu0 0.0
    %268 = vmatprep.subr.mxu0 0.0
    %269 = vmatpush2.msra.mxu0 0.0
    %270 = vmatprep.subr.mxu0 0.0
    %271 = vmatpush2.msra.mxu0 0.0
    %272 = vmatprep.subr.mxu0 0.0
    %273 = vmatpush2.msra.mxu0 0.0
    %274 = vmatprep.subr.mxu0 0.0
    %275 = vmatpush2.msra.mxu0 0.0
    %276 = vmatprep.subr.mxu0 0.0
    %277 = vmatpush2.msra.mxu0 0.0
    %278 = vmatprep.subr.mxu0 0.0
    %279 = vmatpush2.msra.mxu0 0.0
    %280 = vmatprep.subr.mxu0 0.0
    %281 = vmatpush2.msra.mxu0 0.0
    %282 = vmatprep.subr.mxu0 0.0
    %283 = vmatpush2.msra.mxu0 0.0
    %284 = vmatprep.subr.mxu0 0.0
    %285 = vmatpush2.msra.mxu0 0.0
    %286 = vmatprep.mubr.f32.mxu0 0.0
    %287 = vmatmul.mubr.f32.gmra.mxu0 %v211
    %v288 = vpop.f32.mrf.mxu0
    %v289 = vadd.f32 0.0, %v288
    %v290 = vpop.f32.mrf.mxu0
    %291 = vmatprep.mubr.f32.mxu0 0.0
    %292 = vmatmul.mubr.f32.gmra.mxu0 %v214
    %v293 = vpop.f32.mrf.mxu0
    %v294 = vadd.f32 0.0, %v293
    %v295 = vpop.f32.mrf.mxu0
    %296 = vmatprep.mubr.f32.mxu0 0.0
    %297 = vmatmul.mubr.f32.gmra.mxu0 %v217
    %v298 = vpop.f32.mrf.mxu0
    %v299 = vadd.f32 0.0, %v298
    %v300 = vpop.f32.mrf.mxu0
    %301 = vmatprep.mubr.f32.mxu0 0.0
    %302 = vmatmul.mubr.f32.gmra.mxu0 %v220
    %v303 = vpop.f32.mrf.mxu0
    %v304 = vadd.f32 0.0, %v303
    %v305 = vpop.f32.mrf.mxu0
    %306 = vdwg.mxu0
    %s307 = scalar_lea.vmem %s5, 32
    %v308 = vld [vmem:[%s307] sm:$0xff]
    %v309 = vld [vmem:[%s307 + $0x8] sm:$0xff]
    %v310 = vld [vmem:[%s307 + $0x10] sm:$0xff]
    %v311 = vld [vmem:[%s307 + $0x18] sm:$0xff]
    %v313 = vsel %vm80, %v204, 0
    %v316 = vsel %vm80, %v205, 0
    %318 = vmatprep.subr.mxu0 0.0
    %319 = vmatpush1.msra.mxu0 0.0
    %320 = vmatprep.subr.mxu0 0.0
    %321 = vmatpush1.msra.mxu0 0.0
    %322 = vmatprep.subr.mxu0 0.0
    %323 = vmatpush1.msra.mxu0 0.0
    %324 = vmatprep.subr.mxu0 0.0
    %325 = vmatpush1.msra.mxu0 0.0
    %326 = vmatprep.subr.mxu0 0.0
    %327 = vmatpush1.msra.mxu0 0.0
    %328 = vmatprep.subr.mxu0 0.0
    %329 = vmatpush1.msra.mxu0 0.0
    %330 = vmatprep.subr.mxu0 0.0
    %331 = vmatpush1.msra.mxu0 0.0
    %332 = vmatprep.subr.mxu0 0.0
    %333 = vmatpush1.msra.mxu0 0.0
    %334 = vmatprep.subr.mxu0 0.0
    %335 = vmatpush1.msra.mxu0 0.0
    %336 = vmatprep.subr.mxu0 0.0
    %337 = vmatpush1.msra.mxu0 0.0
    %338 = vmatprep.subr.mxu0 0.0
    %339 = vmatpush1.msra.mxu0 0.0
    %340 = vmatprep.subr.mxu0 0.0
    %341 = vmatpush1.msra.mxu0 0.0
    %342 = vmatprep.subr.mxu0 0.0
    %343 = vmatpush1.msra.mxu0 %v311
    %344 = vmatprep.subr.mxu0 0.0
    %345 = vmatpush1.msra.mxu0 %v310
    %346 = vmatprep.subr.mxu0 0.0
    %347 = vmatpush1.msra.mxu0 %v309
    %348 = vmatprep.subr.mxu0 0.0
    %349 = vmatpush1.msra.mxu0 %v308
    %350 = vmatprep.subr.mxu0 0.0
    %351 = vmatpush2.msra.mxu0 0.0
    %352 = vmatprep.subr.mxu0 0.0
    %353 = vmatpush2.msra.mxu0 0.0
    %354 = vmatprep.subr.mxu0 0.0
    %355 = vmatpush2.msra.mxu0 0.0
    %356 = vmatprep.subr.mxu0 0.0
    %357 = vmatpush2.msra.mxu0 0.0
    %358 = vmatprep.subr.mxu0 0.0
    %359 = vmatpush2.msra.mxu0 0.0
    %360 = vmatprep.subr.mxu0 0.0
    %361 = vmatpush2.msra.mxu0 0.0
    %362 = vmatprep.subr.mxu0 0.0
    %363 = vmatpush2.msra.mxu0 0.0
    %364 = vmatprep.subr.mxu0 0.0
    %365 = vmatpush2.msra.mxu0 0.0
    %366 = vmatprep.subr.mxu0 0.0
    %367 = vmatpush2.msra.mxu0 0.0
    %368 = vmatprep.subr.mxu0 0.0
    %369 = vmatpush2.msra.mxu0 0.0
    %370 = vmatprep.subr.mxu0 0.0
    %371 = vmatpush2.msra.mxu0 0.0
    %372 = vmatprep.subr.mxu0 0.0
    %373 = vmatpush2.msra.mxu0 0.0
    %374 = vmatprep.subr.mxu0 0.0
    %375 = vmatpush2.msra.mxu0 0.0
    %376 = vmatprep.subr.mxu0 0.0
    %377 = vmatpush2.msra.mxu0 0.0
    %378 = vmatprep.subr.mxu0 0.0
    %379 = vmatpush2.msra.mxu0 0.0
    %380 = vmatprep.subr.mxu0 0.0
    %381 = vmatpush2.msra.mxu0 0.0
    %382 = vmatprep.mubr.f32.mxu0 0.0
    %383 = vmatmul.mubr.f32.gmra.mxu0 %v313
    %v384 = vpop.f32.mrf.mxu0
    %v385 = vadd.f32 0.0, %v384
    %v386 = vpop.f32.mrf.mxu0
    %387 = vmatprep.mubr.f32.mxu0 0.0
    %388 = vmatmul.mubr.f32.gmra.mxu0 %v316
    %v389 = vpop.f32.mrf.mxu0
    %v390 = vadd.f32 0.0, %v389
    %v391 = vpop.f32.mrf.mxu0
    %392 = vdwg.mxu0
    %s393 = scalar_lea.vmem %s5, 64
    %v394 = vld [vmem:[%s393] sm:$0xff]
    %v395 = vld [vmem:[%s393 + $0x8] sm:$0xff]
    %v396 = vld [vmem:[%s393 + $0x10] sm:$0xff]
    %v397 = vld [vmem:[%s393 + $0x18] sm:$0xff]
    %398 = vmatprep.subr.mxu0 0.0
    %399 = vmatpush1.msra.mxu0 0.0
    %400 = vmatprep.subr.mxu0 0.0
    %401 = vmatpush1.msra.mxu0 0.0
    %402 = vmatprep.subr.mxu0 0.0
    %403 = vmatpush1.msra.mxu0 0.0
    %404 = vmatprep.subr.mxu0 0.0
    %405 = vmatpush1.msra.mxu0 0.0
    %406 = vmatprep.subr.mxu0 0.0
    %407 = vmatpush1.msra.mxu0 0.0
    %408 = vmatprep.subr.mxu0 0.0
    %409 = vmatpush1.msra.mxu0 0.0
    %410 = vmatprep.subr.mxu0 0.0
    %411 = vmatpush1.msra.mxu0 0.0
    %412 = vmatprep.subr.mxu0 0.0
    %413 = vmatpush1.msra.mxu0 0.0
    %414 = vmatprep.subr.mxu0 0.0
    %415 = vmatpush1.msra.mxu0 0.0
    %416 = vmatprep.subr.mxu0 0.0
    %417 = vmatpush1.msra.mxu0 0.0
    %418 = vmatprep.subr.mxu0 0.0
    %419 = vmatpush1.msra.mxu0 0.0
    %420 = vmatprep.subr.mxu0 0.0
    %421 = vmatpush1.msra.mxu0 0.0
    %422 = vmatprep.subr.mxu0 0.0
    %423 = vmatpush1.msra.mxu0 %v397
    %424 = vmatprep.subr.mxu0 0.0
    %425 = vmatpush1.msra.mxu0 %v396
    %426 = vmatprep.subr.mxu0 0.0
    %427 = vmatpush1.msra.mxu0 %v395
    %428 = vmatprep.subr.mxu0 0.0
    %429 = vmatpush1.msra.mxu0 %v394
    %430 = vmatprep.subr.mxu0 0.0
    %431 = vmatpush2.msra.mxu0 0.0
    %432 = vmatprep.subr.mxu0 0.0
    %433 = vmatpush2.msra.mxu0 0.0
    %434 = vmatprep.subr.mxu0 0.0
    %435 = vmatpush2.msra.mxu0 0.0
    %436 = vmatprep.subr.mxu0 0.0
    %437 = vmatpush2.msra.mxu0 0.0
    %438 = vmatprep.subr.mxu0 0.0
    %439 = vmatpush2.msra.mxu0 0.0
    %440 = vmatprep.subr.mxu0 0.0
    %441 = vmatpush2.msra.mxu0 0.0
    %442 = vmatprep.subr.mxu0 0.0
    %443 = vmatpush2.msra.mxu0 0.0
    %444 = vmatprep.subr.mxu0 0.0
    %445 = vmatpush2.msra.mxu0 0.0
    %446 = vmatprep.subr.mxu0 0.0
    %447 = vmatpush2.msra.mxu0 0.0
    %448 = vmatprep.subr.mxu0 0.0
    %449 = vmatpush2.msra.mxu0 0.0
    %450 = vmatprep.subr.mxu0 0.0
    %451 = vmatpush2.msra.mxu0 0.0
    %452 = vmatprep.subr.mxu0 0.0
    %453 = vmatpush2.msra.mxu0 0.0
    %454 = vmatprep.subr.mxu0 0.0
    %455 = vmatpush2.msra.mxu0 0.0
    %456 = vmatprep.subr.mxu0 0.0
    %457 = vmatpush2.msra.mxu0 0.0
    %458 = vmatprep.subr.mxu0 0.0
    %459 = vmatpush2.msra.mxu0 0.0
    %460 = vmatprep.subr.mxu0 0.0
    %461 = vmatpush2.msra.mxu0 0.0
    %462 = vmatprep.mubr.f32.mxu0 0.0
    %463 = vmatmul.mubr.f32.gmra.mxu0 %v313
    %v464 = vpop.f32.mrf.mxu0
    %v465 = vadd.f32 0.0, %v464
    %v466 = vpop.f32.mrf.mxu0
    %467 = vmatprep.mubr.f32.mxu0 0.0
    %468 = vmatmul.mubr.f32.gmra.mxu0 %v316
    %v469 = vpop.f32.mrf.mxu0
    %v470 = vadd.f32 0.0, %v469
    %v471 = vpop.f32.mrf.mxu0
    %472 = vdwg.mxu0
    %v473 = vld [vmem:[%s9] sm:$0xff]
    %v474 = vld [vmem:[%s9 + $0x8] sm:$0xff]
    %v475 = vld [vmem:[%s9 + $0x10] sm:$0xff]
    %v476 = vld [vmem:[%s9 + $0x18] sm:$0xff]
    %v477 = vld [vmem:[%s9 + $0x20] sm:$0xff]
    %v478 = vld [vmem:[%s9 + $0x28] sm:$0xff]
    %v479 = vld [vmem:[%s9 + $0x30] sm:$0xff]
    %v480 = vld [vmem:[%s9 + $0x38] sm:$0xff]
    %v481 = vmul.f32 %v385, %v473
    %v482 = vmul.f32 %v390, %v474
    %v483 = vmul.f32 %v385, %v475
    %v484 = vmul.f32 %v390, %v476
    %v485 = vmul.f32 %v385, %v477
    %v486 = vmul.f32 %v390, %v478
    %v487 = vmul.f32 %v385, %v479
    %v488 = vmul.f32 %v390, %v480
    %v489 = vmul.f32 %v465, %v473
    %v490 = vmul.f32 %v470, %v474
    %v491 = vmul.f32 %v465, %v475
    %v492 = vmul.f32 %v470, %v476
    %v493 = vmul.f32 %v465, %v477
    %v494 = vmul.f32 %v470, %v478
    %v495 = vmul.f32 %v465, %v479
    %v496 = vmul.f32 %v470, %v480
    %v498 = vsel %vm80, %v289, 0
    %v501 = vsel %vm80, %v294, 0
    %v504 = vsel %vm80, %v299, 0
    %v507 = vsel %vm80, %v304, 0
    %v510 = vsel %vm80, %v481, 0
    %v513 = vsel %vm80, %v482, 0
    %v516 = vsel %vm80, %v483, 0
    %v519 = vsel %vm80, %v484, 0
    %v522 = vsel %vm80, %v485, 0
    %v525 = vsel %vm80, %v486, 0
    %v528 = vsel %vm80, %v487, 0
    %v531 = vsel %vm80, %v488, 0
    %533 = vmatprep.subr.mxu0 0.0
    %534 = vmatpush1.xpose.msra.mxu0 0.0
    %535 = vmatprep.subr.mxu0 0.0
    %536 = vmatpush1.xpose.msra.mxu0 0.0
    %537 = vmatprep.subr.mxu0 0.0
    %538 = vmatpush1.xpose.msra.mxu0 0.0
    %539 = vmatprep.subr.mxu0 0.0
    %540 = vmatpush1.xpose.msra.mxu0 0.0
    %541 = vmatprep.subr.mxu0 0.0
    %542 = vmatpush1.xpose.msra.mxu0 0.0
    %543 = vmatprep.subr.mxu0 0.0
    %544 = vmatpush1.xpose.msra.mxu0 0.0
    %545 = vmatprep.subr.mxu0 0.0
    %546 = vmatpush1.xpose.msra.mxu0 0.0
    %547 = vmatprep.subr.mxu0 0.0
    %548 = vmatpush1.xpose.msra.mxu0 0.0
    %549 = vmatprep.subr.mxu0 0.0
    %550 = vmatpush1.xpose.msra.mxu0 %v531
    %551 = vmatprep.subr.mxu0 0.0
    %552 = vmatpush1.xpose.msra.mxu0 %v528
    %553 = vmatprep.subr.mxu0 0.0
    %554 = vmatpush1.xpose.msra.mxu0 %v525
    %555 = vmatprep.subr.mxu0 0.0
    %556 = vmatpush1.xpose.msra.mxu0 %v522
    %557 = vmatprep.subr.mxu0 0.0
    %558 = vmatpush1.xpose.msra.mxu0 %v519
    %559 = vmatprep.subr.mxu0 0.0
    %560 = vmatpush1.xpose.msra.mxu0 %v516
    %561 = vmatprep.subr.mxu0 0.0
    %562 = vmatpush1.xpose.msra.mxu0 %v513
    %563 = vmatprep.subr.mxu0 0.0
    %564 = vmatpush1.xpose.msra.mxu0 %v510
    %565 = vmatprep.subr.mxu0 0.0
    %566 = vmatpush2.xpose.msra.mxu0 0.0
    %567 = vmatprep.subr.mxu0 0.0
    %568 = vmatpush2.xpose.msra.mxu0 0.0
    %569 = vmatprep.subr.mxu0 0.0
    %570 = vmatpush2.xpose.msra.mxu0 0.0
    %571 = vmatprep.subr.mxu0 0.0
    %572 = vmatpush2.xpose.msra.mxu0 0.0
    %573 = vmatprep.subr.mxu0 0.0
    %574 = vmatpush2.xpose.msra.mxu0 0.0
    %575 = vmatprep.subr.mxu0 0.0
    %576 = vmatpush2.xpose.msra.mxu0 0.0
    %577 = vmatprep.subr.mxu0 0.0
    %578 = vmatpush2.xpose.msra.mxu0 0.0
    %579 = vmatprep.subr.mxu0 0.0
    %580 = vmatpush2.xpose.msra.mxu0 0.0
    %581 = vmatprep.subr.mxu0 0.0
    %582 = vmatpush2.xpose.msra.mxu0 0.0
    %583 = vmatprep.subr.mxu0 0.0
    %584 = vmatpush2.xpose.msra.mxu0 0.0
    %585 = vmatprep.subr.mxu0 0.0
    %586 = vmatpush2.xpose.msra.mxu0 0.0
    %587 = vmatprep.subr.mxu0 0.0
    %588 = vmatpush2.xpose.msra.mxu0 0.0
    %589 = vmatprep.subr.mxu0 0.0
    %590 = vmatpush2.xpose.msra.mxu0 0.0
    %591 = vmatprep.subr.mxu0 0.0
    %592 = vmatpush2.xpose.msra.mxu0 0.0
    %593 = vmatprep.subr.mxu0 0.0
    %594 = vmatpush2.xpose.msra.mxu0 0.0
    %595 = vmatprep.subr.mxu0 0.0
    %596 = vmatpush2.xpose.msra.mxu0 0.0
    %597 = vmatprep.mubr.f32.mxu0 0.0
    %598 = vmatmul.mubr.f32.gmra.mxu0 %v498
    %v599 = vpop.f32.mrf.mxu0
    %v600 = vadd.f32 0.0, %v599
    %v601 = vpop.f32.mrf.mxu0
    %602 = vmatprep.mubr.f32.mxu0 0.0
    %603 = vmatmul.mubr.f32.gmra.mxu0 %v501
    %v604 = vpop.f32.mrf.mxu0
    %v605 = vadd.f32 0.0, %v604
    %v606 = vpop.f32.mrf.mxu0
    %607 = vmatprep.mubr.f32.mxu0 0.0
    %608 = vmatmul.mubr.f32.gmra.mxu0 %v504
    %v609 = vpop.f32.mrf.mxu0
    %v610 = vadd.f32 0.0, %v609
    %v611 = vpop.f32.mrf.mxu0
    %612 = vmatprep.mubr.f32.mxu0 0.0
    %613 = vmatmul.mubr.f32.gmra.mxu0 %v507
    %v614 = vpop.f32.mrf.mxu0
    %v615 = vadd.f32 0.0, %v614
    %v616 = vpop.f32.mrf.mxu0
    %617 = vdwg.mxu0
    %v618 = vmul.f32 %v600, 0.35355338
    %v619 = vmul.f32 %v605, 0.35355338
    %v620 = vmul.f32 %v610, 0.35355338
    %v621 = vmul.f32 %v615, 0.35355338
    %v622 = vld [vmem:[%s10] sm:$0xff]
    %v623 = vld [vmem:[%s10 + $0x8] sm:$0xff]
    %v624 = vld [vmem:[%s10 + $0x10] sm:$0xff]
    %v625 = vld [vmem:[%s10 + $0x18] sm:$0xff]
    %v626 = vadd.f32 %v618, %v622
    %v627 = vadd.f32 %v619, %v623
    %v628 = vadd.f32 %v620, %v624
    %v629 = vadd.f32 %v621, %v625
    %vm630 = vcmask 523264
    %v631 = vsel %vm630, %v626, -inf
    %632 = vmax.xlane.f32.xlu0 %v631
    %v633 = vpop.xlane.xlu0 %632
    %v634 = vsel %vm630, %v627, -inf
    %635 = vmax.xlane.f32.xlu0 %v634
    %v636 = vpop.xlane.xlu0 %635
    %v637 = vsel %vm630, %v628, -inf
    %638 = vmax.xlane.f32.xlu0 %v637
    %v639 = vpop.xlane.xlu0 %638
    %v640 = vsel %vm630, %v629, -inf
    %641 = vmax.xlane.f32.xlu0 %v640
    %v642 = vpop.xlane.xlu0 %641
    %v643 = vsub.f32 %v626, %v633
    %v644 = vsub.f32 %v627, %v636
    %v645 = vsub.f32 %v628, %v639
    %v646 = vsub.f32 %v629, %v642
    %v647 = vmul.f32 %v643, 1.442695
    %v648 = vpow.pop %v647
    %v649 = vmul.f32 %v644, 1.442695
    %v650 = vpow.pop %v649
    %v651 = vmul.f32 %v645, 1.442695
    %v652 = vpow.pop %v651
    %v653 = vmul.f32 %v646, 1.442695
    %v654 = vpow.pop %v653
    %v656 = vsel %vm630, %v648, 0
    %v659 = vsel %vm630, %v650, 0
    %v662 = vsel %vm630, %v652, 0
    %v665 = vsel %vm630, %v654, 0
    %667 = vmatprep.subr.mxu0 0.0
    %668 = vmatpush1.msra.mxu0 0.0
    %669 = vmatprep.subr.mxu0 0.0
    %670 = vmatpush1.msra.mxu0 0.0
    %671 = vmatprep.subr.mxu0 0.0
    %672 = vmatpush1.msra.mxu0 0.0
    %673 = vmatprep.subr.mxu0 0.0
    %674 = vmatpush1.msra.mxu0 0.0
    %675 = vmatprep.subr.mxu0 0.0
    %676 = vmatpush1.msra.mxu0 0.0
    %677 = vmatprep.subr.mxu0 0.0
    %678 = vmatpush1.msra.mxu0 0.0
    %679 = vmatprep.subr.mxu0 0.0
    %680 = vmatpush1.msra.mxu0 0.0
    %681 = vmatprep.subr.mxu0 0.0
    %682 = vmatpush1.msra.mxu0 0.0
    %683 = vmatprep.subr.mxu0 0.0
    %684 = vmatpush1.msra.mxu0 %v496
    %685 = vmatprep.subr.mxu0 0.0
    %686 = vmatpush1.msra.mxu0 %v495
    %687 = vmatprep.subr.mxu0 0.0
    %688 = vmatpush1.msra.mxu0 %v494
    %689 = vmatprep.subr.mxu0 0.0
    %690 = vmatpush1.msra.mxu0 %v493
    %691 = vmatprep.subr.mxu0 0.0
    %692 = vmatpush1.msra.mxu0 %v492
    %693 = vmatprep.subr.mxu0 0.0
    %694 = vmatpush1.msra.mxu0 %v491
    %695 = vmatprep.subr.mxu0 0.0
    %696 = vmatpush1.msra.mxu0 %v490
    %697 = vmatprep.subr.mxu0 0.0
    %698 = vmatpush1.msra.mxu0 %v489
    %699 = vmatprep.subr.mxu0 0.0
    %700 = vmatpush2.msra.mxu0 0.0
    %701 = vmatprep.subr.mxu0 0.0
    %702 = vmatpush2.msra.mxu0 0.0
    %703 = vmatprep.subr.mxu0 0.0
    %704 = vmatpush2.msra.mxu0 0.0
    %705 = vmatprep.subr.mxu0 0.0
    %706 = vmatpush2.msra.mxu0 0.0
    %707 = vmatprep.subr.mxu0 0.0
    %708 = vmatpush2.msra.mxu0 0.0
    %709 = vmatprep.subr.mxu0 0.0
    %710 = vmatpush2.msra.mxu0 0.0
    %711 = vmatprep.subr.mxu0 0.0
    %712 = vmatpush2.msra.mxu0 0.0
    %713 = vmatprep.subr.mxu0 0.0
    %714 = vmatpush2.msra.mxu0 0.0
    %715 = vmatprep.subr.mxu0 0.0
    %716 = vmatpush2.msra.mxu0 0.0
    %717 = vmatprep.subr.mxu0 0.0
    %718 = vmatpush2.msra.mxu0 0.0
    %719 = vmatprep.subr.mxu0 0.0
    %720 = vmatpush2.msra.mxu0 0.0
    %721 = vmatprep.subr.mxu0 0.0
    %722 = vmatpush2.msra.mxu0 0.0
    %723 = vmatprep.subr.mxu0 0.0
    %724 = vmatpush2.msra.mxu0 0.0
    %725 = vmatprep.subr.mxu0 0.0
    %726 = vmatpush2.msra.mxu0 0.0
    %727 = vmatprep.subr.mxu0 0.0
    %728 = vmatpush2.msra.mxu0 0.0
    %729 = vmatprep.subr.mxu0 0.0
    %730 = vmatpush2.msra.mxu0 0.0
    %731 = vmatprep.mubr.f32.mxu0 0.0
    %732 = vmatmul.mubr.f32.gmra.mxu0 %v656
    %v733 = vpop.f32.mrf.mxu0
    %v734 = vadd.f32 0.0, %v733
    %v735 = vpop.f32.mrf.mxu0
    %736 = vmatprep.mubr.f32.mxu0 0.0
    %737 = vmatmul.mubr.f32.gmra.mxu0 %v659
    %v738 = vpop.f32.mrf.mxu0
    %v739 = vadd.f32 0.0, %v738
    %v740 = vpop.f32.mrf.mxu0
    %741 = vmatprep.mubr.f32.mxu0 0.0
    %742 = vmatmul.mubr.f32.gmra.mxu0 %v662
    %v743 = vpop.f32.mrf.mxu0
    %v744 = vadd.f32 0.0, %v743
    %v745 = vpop.f32.mrf.mxu0
    %746 = vmatprep.mubr.f32.mxu0 0.0
    %747 = vmatmul.mubr.f32.gmra.mxu0 %v665
    %v748 = vpop.f32.mrf.mxu0
    %v749 = vadd.f32 0.0, %v748
    %v750 = vpop.f32.mrf.mxu0
    %751 = vdwg.mxu0
    %752 = vmatprep.subr.mxu0 0.0
    %753 = vmatpush1.msra.mxu0 0.0
    %754 = vmatprep.subr.mxu0 0.0
    %755 = vmatpush1.msra.mxu0 0.0
    %756 = vmatprep.subr.mxu0 0.0
    %757 = vmatpush1.msra.mxu0 0.0
    %758 = vmatprep.subr.mxu0 0.0
    %759 = vmatpush1.msra.mxu0 0.0
    %760 = vmatprep.subr.mxu0 0.0
    %761 = vmatpush1.msra.mxu0 0.0
    %762 = vmatprep.subr.mxu0 0.0
    %763 = vmatpush1.msra.mxu0 0.0
    %764 = vmatprep.subr.mxu0 0.0
    %765 = vmatpush1.msra.mxu0 0.0
    %766 = vmatprep.subr.mxu0 0.0
    %767 = vmatpush1.msra.mxu0 0.0
    %768 = vmatprep.subr.mxu0 0.0
    %769 = vmatpush1.msra.mxu0 %v480
    %770 = vmatprep.subr.mxu0 0.0
    %771 = vmatpush1.msra.mxu0 %v479
    %772 = vmatprep.subr.mxu0 0.0
    %773 = vmatpush1.msra.mxu0 %v478
    %774 = vmatprep.subr.mxu0 0.0
    %775 = vmatpush1.msra.mxu0 %v477
    %776 = vmatprep.subr.mxu0 0.0
    %777 = vmatpush1.msra.mxu0 %v476
    %778 = vmatprep.subr.mxu0 0.0
    %779 = vmatpush1.msra.mxu0 %v475
    %780 = vmatprep.subr.mxu0 0.0
    %781 = vmatpush1.msra.mxu0 %v474
    %782 = vmatprep.subr.mxu0 0.0
    %783 = vmatpush1.msra.mxu0 %v473
    %784 = vmatprep.subr.mxu0 0.0
    %785 = vmatpush2.msra.mxu0 0.0
    %786 = vmatprep.subr.mxu0 0.0
    %787 = vmatpush2.msra.mxu0 0.0
    %788 = vmatprep.subr.mxu0 0.0
    %789 = vmatpush2.msra.mxu0 0.0
    %790 = vmatprep.subr.mxu0 0.0
    %791 = vmatpush2.msra.mxu0 0.0
    %792 = vmatprep.subr.mxu0 0.0
    %793 = vmatpush2.msra.mxu0 0.0
    %794 = vmatprep.subr.mxu0 0.0
    %795 = vmatpush2.msra.mxu0 0.0
    %796 = vmatprep.subr.mxu0 0.0
    %797 = vmatpush2.msra.mxu0 0.0
    %798 = vmatprep.subr.mxu0 0.0
    %799 = vmatpush2.msra.mxu0 0.0
    %800 = vmatprep.subr.mxu0 0.0
    %801 = vmatpush2.msra.mxu0 0.0
    %802 = vmatprep.subr.mxu0 0.0
    %803 = vmatpush2.msra.mxu0 0.0
    %804 = vmatprep.subr.mxu0 0.0
    %805 = vmatpush2.msra.mxu0 0.0
    %806 = vmatprep.subr.mxu0 0.0
    %807 = vmatpush2.msra.mxu0 0.0
    %808 = vmatprep.subr.mxu0 0.0
    %809 = vmatpush2.msra.mxu0 0.0
    %810 = vmatprep.subr.mxu0 0.0
    %811 = vmatpush2.msra.mxu0 0.0
    %812 = vmatprep.subr.mxu0 0.0
    %813 = vmatpush2.msra.mxu0 0.0
    %814 = vmatprep.subr.mxu0 0.0
    %815 = vmatpush2.msra.mxu0 0.0
    %816 = vmatprep.mubr.f32.mxu0 0.0
    %817 = vmatmul.mubr.f32.gmra.mxu0 %v656
    %v818 = vpop.f32.mrf.mxu0
    %v819 = vadd.f32 0.0, %v818
    %v820 = vpop.f32.mrf.mxu0
    %821 = vmatprep.mubr.f32.mxu0 0.0
    %822 = vmatmul.mubr.f32.gmra.mxu0 %v659
    %v823 = vpop.f32.mrf.mxu0
    %v824 = vadd.f32 0.0, %v823
    %v825 = vpop.f32.mrf.mxu0
    %826 = vmatprep.mubr.f32.mxu0 0.0
    %827 = vmatmul.mubr.f32.gmra.mxu0 %v662
    %v828 = vpop.f32.mrf.mxu0
    %v829 = vadd.f32 0.0, %v828
    %v830 = vpop.f32.mrf.mxu0
    %831 = vmatprep.mubr.f32.mxu0 0.0
    %832 = vmatmul.mubr.f32.gmra.mxu0 %v665
    %v833 = vpop.f32.mrf.mxu0
    %v834 = vadd.f32 0.0, %v833
    %v835 = vpop.f32.mrf.mxu0
    %836 = vdwg.mxu0
    %v837 = vrcp.pop %v819
    %v838 = vmul.f32 %v734, %v837
    %v839 = vrcp.pop %v824
    %v840 = vmul.f32 %v739, %v839
    %v841 = vrcp.pop %v829
    %v842 = vmul.f32 %v744, %v841
    %v843 = vrcp.pop %v834
    %v844 = vmul.f32 %v749, %v843
    %s845 = scalar_lea.vmem %s5, 96
    %v846 = vld [vmem:[%s845] sm:$0xff]
    %v847 = vld [vmem:[%s845 + $0x8] sm:$0xff]
    %v848 = vld [vmem:[%s845 + $0x10] sm:$0xff]
    %v849 = vld [vmem:[%s845 + $0x18] sm:$0xff]
    %v850 = vlaneseq
    %v851 = vshrl.u32 %v850, 7
    %v852 = vsub.s32 6, %v851
    %v853 = vrot.slane %v45, %v852
    %v855 = vsel %vm80, %v838, 0
    %v858 = vsel %vm80, %v840, 0
    %v861 = vsel %vm80, %v842, 0
    %v864 = vsel %vm80, %v844, 0
    %866 = vmatprep.subr.mxu0 0.0
    %867 = vmatpush1.msra.mxu0 0.0
    %868 = vmatprep.subr.mxu0 0.0
    %869 = vmatpush1.msra.mxu0 0.0
    %870 = vmatprep.subr.mxu0 0.0
    %871 = vmatpush1.msra.mxu0 0.0
    %872 = vmatprep.subr.mxu0 0.0
    %873 = vmatpush1.msra.mxu0 0.0
    %874 = vmatprep.subr.mxu0 0.0
    %875 = vmatpush1.msra.mxu0 0.0
    %876 = vmatprep.subr.mxu0 0.0
    %877 = vmatpush1.msra.mxu0 0.0
    %878 = vmatprep.subr.mxu0 0.0
    %879 = vmatpush1.msra.mxu0 0.0
    %880 = vmatprep.subr.mxu0 0.0
    %881 = vmatpush1.msra.mxu0 0.0
    %882 = vmatprep.subr.mxu0 0.0
    %883 = vmatpush1.msra.mxu0 0.0
    %884 = vmatprep.subr.mxu0 0.0
    %885 = vmatpush1.msra.mxu0 0.0
    %886 = vmatprep.subr.mxu0 0.0
    %887 = vmatpush1.msra.mxu0 0.0
    %888 = vmatprep.subr.mxu0 0.0
    %889 = vmatpush1.msra.mxu0 0.0
    %890 = vmatprep.subr.mxu0 0.0
    %891 = vmatpush1.msra.mxu0 %v849
    %892 = vmatprep.subr.mxu0 0.0
    %893 = vmatpush1.msra.mxu0 %v848
    %894 = vmatprep.subr.mxu0 0.0
    %895 = vmatpush1.msra.mxu0 %v847
    %896 = vmatprep.subr.mxu0 0.0
    %897 = vmatpush1.msra.mxu0 %v846
    %898 = vmatprep.subr.mxu0 0.0
    %899 = vmatpush2.msra.mxu0 0.0
    %900 = vmatprep.subr.mxu0 0.0
    %901 = vmatpush2.msra.mxu0 0.0
    %902 = vmatprep.subr.mxu0 0.0
    %903 = vmatpush2.msra.mxu0 0.0
    %904 = vmatprep.subr.mxu0 0.0
    %905 = vmatpush2.msra.mxu0 0.0
    %906 = vmatprep.subr.mxu0 0.0
    %907 = vmatpush2.msra.mxu0 0.0
    %908 = vmatprep.subr.mxu0 0.0
    %909 = vmatpush2.msra.mxu0 0.0
    %910 = vmatprep.subr.mxu0 0.0
    %911 = vmatpush2.msra.mxu0 0.0
    %912 = vmatprep.subr.mxu0 0.0
    %913 = vmatpush2.msra.mxu0 0.0
    %914 = vmatprep.subr.mxu0 0.0
    %915 = vmatpush2.msra.mxu0 0.0
    %916 = vmatprep.subr.mxu0 0.0
    %917 = vmatpush2.msra.mxu0 0.0
    %918 = vmatprep.subr.mxu0 0.0
    %919 = vmatpush2.msra.mxu0 0.0
    %920 = vmatprep.subr.mxu0 0.0
    %921 = vmatpush2.msra.mxu0 0.0
    %922 = vmatprep.subr.mxu0 0.0
    %923 = vmatpush2.msra.mxu0 0.0
    %924 = vmatprep.subr.mxu0 0.0
    %925 = vmatpush2.msra.mxu0 0.0
    %926 = vmatprep.subr.mxu0 0.0
    %927 = vmatpush2.msra.mxu0 0.0
    %928 = vmatprep.subr.mxu0 0.0
    %929 = vmatpush2.msra.mxu0 0.0
    %930 = vmatprep.mubr.f32.mxu0 0.0
    %931 = vmatmul.mubr.f32.gmra.mxu0 %v855
    %v932 = vpop.f32.mrf.mxu0
    %v933 = vadd.f32 %v853, %v932
    %v934 = vpop.f32.mrf.mxu0
    %935 = vmatprep.mubr.f32.mxu0 0.0
    %936 = vmatmul.mubr.f32.gmra.mxu0 %v858
    %v937 = vpop.f32.mrf.mxu0
    %v938 = vadd.f32 %v853, %v937
    %v939 = vpop.f32.mrf.mxu0
    %940 = vmatprep.mubr.f32.mxu0 0.0
    %941 = vmatmul.mubr.f32.gmra.mxu0 %v861
    %v942 = vpop.f32.mrf.mxu0
    %v943 = vadd.f32 %v853, %v942
    %v944 = vpop.f32.mrf.mxu0
    %945 = vmatprep.mubr.f32.mxu0 0.0
    %946 = vmatmul.mubr.f32.gmra.mxu0 %v864
    %v947 = vpop.f32.mrf.mxu0
    %v948 = vadd.f32 %v853, %v947
    %v949 = vpop.f32.mrf.mxu0
    %950 = vdwg.mxu0
    %v951 = vmul.f32 %v56, %v933
    %v952 = vmul.f32 %v57, %v938
    %v953 = vmul.f32 %v58, %v943
    %v954 = vmul.f32 %v59, %v948
    %v955 = vadd.f32 %v39, %v951
    %v956 = vadd.f32 %v40, %v952
    %v957 = vadd.f32 %v41, %v953
    %v958 = vadd.f32 %v42, %v954
    %v959 = vsel %vm80, %v955, 0.0
    %960 = vadd.xlane.f32.xlu0 %v959
    %v961 = vpop.xlane.xlu0 %960
    %v962 = vsel %vm80, %v956, 0.0
    %963 = vadd.xlane.f32.xlu0 %v962
    %v964 = vpop.xlane.xlu0 %963
    %v965 = vsel %vm80, %v957, 0.0
    %966 = vadd.xlane.f32.xlu0 %v965
    %v967 = vpop.xlane.xlu0 %966
    %v968 = vsel %vm80, %v958, 0.0
    %969 = vadd.xlane.f32.xlu0 %v968
    %v970 = vpop.xlane.xlu0 %969
    %v971 = vmul.f32 %v961, %v93
    %v972 = vmul.f32 %v964, %v93
    %v973 = vmul.f32 %v967, %v93
    %v974 = vmul.f32 %v970, %v93
    %v975 = vsub.f32 %v955, %v971
    %v976 = vsub.f32 %v956, %v972
    %v977 = vsub.f32 %v957, %v973
    %v978 = vsub.f32 %v958, %v974
    %v979 = vmul.f32 %v975, %v975
    %v980 = vmul.f32 %v976, %v976
    %v981 = vmul.f32 %v977, %v977
    %v982 = vmul.f32 %v978, %v978
    %v983 = vsel %vm80, %v979, 0.0
    %984 = vadd.xlane.f32.xlu0 %v983
    %v985 = vpop.xlane.xlu0 %984
    %v986 = vsel %vm80, %v980, 0.0
    %987 = vadd.xlane.f32.xlu0 %v986
    %v988 = vpop.xlane.xlu0 %987
    %v989 = vsel %vm80, %v981, 0.0
    %990 = vadd.xlane.f32.xlu0 %v989
    %v991 = vpop.xlane.xlu0 %990
    %v992 = vsel %vm80, %v982, 0.0
    %993 = vadd.xlane.f32.xlu0 %v992
    %v994 = vpop.xlane.xlu0 %993
    %v995 = vmul.f32 %v985, %v93
    %v996 = vmul.f32 %v988, %v93
    %v997 = vmul.f32 %v991, %v93
    %v998 = vmul.f32 %v994, %v93
    %v999 = vadd.f32 %v995, 1e-05
    %v1000 = vadd.f32 %v996, 1e-05
    %v1001 = vadd.f32 %v997, 1e-05
    %v1002 = vadd.f32 %v998, 1e-05
    %v1003 = vrsqrt.pop %v999
    %v1004 = vrsqrt.pop %v1000
    %v1005 = vrsqrt.pop %v1001
    %v1006 = vrsqrt.pop %v1002
    %v1007 = vmul.f32 %v975, %v1003
    %v1008 = vmul.f32 %v976, %v1004
    %v1009 = vmul.f32 %v977, %v1005
    %v1010 = vmul.f32 %v978, %v1006
    %v1011 = vlaneseq
    %v1012 = vshrl.u32 %v1011, 7
    %v1013 = vsub.s32 4, %v1012
    %v1014 = vrot.slane %v45, %v1013
    %v1015 = vmul.f32 %v1007, %v1014
    %v1016 = vmul.f32 %v1008, %v1014
    %v1017 = vmul.f32 %v1009, %v1014
    %v1018 = vmul.f32 %v1010, %v1014
    %v1019 = vlaneseq
    %v1020 = vshrl.u32 %v1019, 7
    %v1021 = vsub.s32 5, %v1020
    %v1022 = vrot.slane %v45, %v1021
    %v1023 = vadd.f32 %v1015, %v1022
    %v1024 = vadd.f32 %v1016, %v1022
    %v1025 = vadd.f32 %v1017, %v1022
    %v1026 = vadd.f32 %v1018, %v1022
    %v1027 = vadd.f32 %v66, 1.0
    %v1028 = vadd.f32 %v67, 1.0
    %v1029 = vadd.f32 %v68, 1.0
    %v1030 = vadd.f32 %v69, 1.0
    %v1031 = vmul.f32 %v1023, %v1027
    %v1032 = vmul.f32 %v1024, %v1028
    %v1033 = vmul.f32 %v1025, %v1029
    %v1034 = vmul.f32 %v1026, %v1030
    %v1035 = vadd.f32 %v1031, %v61
    %v1036 = vadd.f32 %v1032, %v62
    %v1037 = vadd.f32 %v1033, %v63
    %v1038 = vadd.f32 %v1034, %v64
    %v1039 = vld [vmem:[%s6] sm:$0xff]
    %v1040 = vld [vmem:[%s6 + $0x8] sm:$0xff]
    %v1041 = vld [vmem:[%s6 + $0x10] sm:$0xff]
    %v1042 = vld [vmem:[%s6 + $0x18] sm:$0xff]
    %v1043 = vld [vmem:[%s7] sm:$0x1]
    %v1045 = vlaneseq
    %v1046 = vshrl.u32 %v1045, 7
    %v1047 = vsub.s32 0, %v1046
    %v1048 = vrot.slane %v1043, %v1047
    %v1051 = vsel %vm80, %v1035, 0
    %v1054 = vsel %vm80, %v1036, 0
    %v1057 = vsel %vm80, %v1037, 0
    %v1060 = vsel %vm80, %v1038, 0
    %1062 = vmatprep.subr.mxu0 0.0
    %1063 = vmatpush1.msra.mxu0 0.0
    %1064 = vmatprep.subr.mxu0 0.0
    %1065 = vmatpush1.msra.mxu0 0.0
    %1066 = vmatprep.subr.mxu0 0.0
    %1067 = vmatpush1.msra.mxu0 0.0
    %1068 = vmatprep.subr.mxu0 0.0
    %1069 = vmatpush1.msra.mxu0 0.0
    %1070 = vmatprep.subr.mxu0 0.0
    %1071 = vmatpush1.msra.mxu0 0.0
    %1072 = vmatprep.subr.mxu0 0.0
    %1073 = vmatpush1.msra.mxu0 0.0
    %1074 = vmatprep.subr.mxu0 0.0
    %1075 = vmatpush1.msra.mxu0 0.0
    %1076 = vmatprep.subr.mxu0 0.0
    %1077 = vmatpush1.msra.mxu0 0.0
    %1078 = vmatprep.subr.mxu0 0.0
    %1079 = vmatpush1.msra.mxu0 0.0
    %1080 = vmatprep.subr.mxu0 0.0
    %1081 = vmatpush1.msra.mxu0 0.0
    %1082 = vmatprep.subr.mxu0 0.0
    %1083 = vmatpush1.msra.mxu0 0.0
    %1084 = vmatprep.subr.mxu0 0.0
    %1085 = vmatpush1.msra.mxu0 0.0
    %1086 = vmatprep.subr.mxu0 0.0
    %1087 = vmatpush1.msra.mxu0 %v1042
    %1088 = vmatprep.subr.mxu0 0.0
    %1089 = vmatpush1.msra.mxu0 %v1041
    %1090 = vmatprep.subr.mxu0 0.0
    %1091 = vmatpush1.msra.mxu0 %v1040
    %1092 = vmatprep.subr.mxu0 0.0
    %1093 = vmatpush1.msra.mxu0 %v1039
    %1094 = vmatprep.subr.mxu0 0.0
    %1095 = vmatpush2.msra.mxu0 0.0
    %1096 = vmatprep.subr.mxu0 0.0
    %1097 = vmatpush2.msra.mxu0 0.0
    %1098 = vmatprep.subr.mxu0 0.0
    %1099 = vmatpush2.msra.mxu0 0.0
    %1100 = vmatprep.subr.mxu0 0.0
    %1101 = vmatpush2.msra.mxu0 0.0
    %1102 = vmatprep.subr.mxu0 0.0
    %1103 = vmatpush2.msra.mxu0 0.0
    %1104 = vmatprep.subr.mxu0 0.0
    %1105 = vmatpush2.msra.mxu0 0.0
    %1106 = vmatprep.subr.mxu0 0.0
    %1107 = vmatpush2.msra.mxu0 0.0
    %1108 = vmatprep.subr.mxu0 0.0
    %1109 = vmatpush2.msra.mxu0 0.0
    %1110 = vmatprep.subr.mxu0 0.0
    %1111 = vmatpush2.msra.mxu0 0.0
    %1112 = vmatprep.subr.mxu0 0.0
    %1113 = vmatpush2.msra.mxu0 0.0
    %1114 = vmatprep.subr.mxu0 0.0
    %1115 = vmatpush2.msra.mxu0 0.0
    %1116 = vmatprep.subr.mxu0 0.0
    %1117 = vmatpush2.msra.mxu0 0.0
    %1118 = vmatprep.subr.mxu0 0.0
    %1119 = vmatpush2.msra.mxu0 0.0
    %1120 = vmatprep.subr.mxu0 0.0
    %1121 = vmatpush2.msra.mxu0 0.0
    %1122 = vmatprep.subr.mxu0 0.0
    %1123 = vmatpush2.msra.mxu0 0.0
    %1124 = vmatprep.subr.mxu0 0.0
    %1125 = vmatpush2.msra.mxu0 0.0
    %1126 = vmatprep.mubr.f32.mxu0 0.0
    %1127 = vmatmul.mubr.f32.gmra.mxu0 %v1051
    %v1128 = vpop.f32.mrf.mxu0
    %v1129 = vadd.f32 %v1048, %v1128
    %v1130 = vpop.f32.mrf.mxu0
    %1131 = vmatprep.mubr.f32.mxu0 0.0
    %1132 = vmatmul.mubr.f32.gmra.mxu0 %v1054
    %v1133 = vpop.f32.mrf.mxu0
    %v1134 = vadd.f32 %v1048, %v1133
    %v1135 = vpop.f32.mrf.mxu0
    %1136 = vmatprep.mubr.f32.mxu0 0.0
    %1137 = vmatmul.mubr.f32.gmra.mxu0 %v1057
    %v1138 = vpop.f32.mrf.mxu0
    %v1139 = vadd.f32 %v1048, %v1138
    %v1140 = vpop.f32.mrf.mxu0
    %1141 = vmatprep.mubr.f32.mxu0 0.0
    %1142 = vmatmul.mubr.f32.gmra.mxu0 %v1060
    %v1143 = vpop.f32.mrf.mxu0
    %v1144 = vadd.f32 %v1048, %v1143
    %v1145 = vpop.f32.mrf.mxu0
    %1146 = vdwg.mxu0
    %v1147 = vmul.f32 %v1129, 0.5
    %v1148 = vmul.f32 %v1134, 0.5
    %v1149 = vmul.f32 %v1139, 0.5
    %v1150 = vmul.f32 %v1144, 0.5
    %v1151 = vrcp.pop 1.4142135
    %v1152 = vmul.f32 %v1129, %v1151
    %v1153 = vmul.f32 %v1134, %v1151
    %v1154 = vmul.f32 %v1139, %v1151
    %v1155 = vmul.f32 %v1144, %v1151
    %v1156 = verf.f32.pop %v1152
    %v1157 = verf.f32.pop %v1153
    %v1158 = verf.f32.pop %v1154
    %v1159 = verf.f32.pop %v1155
    %v1160 = vadd.f32 %v1156, 1.0
    %v1161 = vadd.f32 %v1157, 1.0
    %v1162 = vadd.f32 %v1158, 1.0
    %v1163 = vadd.f32 %v1159, 1.0
    %v1164 = vmul.f32 %v1147, %v1160
    %v1165 = vmul.f32 %v1148, %v1161
    %v1166 = vmul.f32 %v1149, %v1162
    %v1167 = vmul.f32 %v1150, %v1163
    %v1168 = vld [vmem:[%s8] sm:$0xff]
    %v1169 = vld [vmem:[%s8 + $0x8] sm:$0xff]
    %v1170 = vld [vmem:[%s8 + $0x10] sm:$0xff]
    %v1171 = vld [vmem:[%s8 + $0x18] sm:$0xff]
    %v1172 = vld [vmem:[%s8 + $0x20] sm:$0xff]
    %v1173 = vld [vmem:[%s8 + $0x28] sm:$0xff]
    %v1174 = vld [vmem:[%s8 + $0x30] sm:$0xff]
    %v1175 = vld [vmem:[%s8 + $0x38] sm:$0xff]
    %v1176 = vld [vmem:[%s8 + $0x40] sm:$0xff]
    %v1177 = vld [vmem:[%s8 + $0x48] sm:$0xff]
    %v1178 = vld [vmem:[%s8 + $0x50] sm:$0xff]
    %v1179 = vld [vmem:[%s8 + $0x58] sm:$0xff]
    %v1180 = vld [vmem:[%s8 + $0x60] sm:$0xff]
    %v1181 = vld [vmem:[%s8 + $0x68] sm:$0xff]
    %v1182 = vld [vmem:[%s8 + $0x70] sm:$0xff]
    %v1183 = vld [vmem:[%s8 + $0x78] sm:$0xff]
    %v1184 = vlaneseq
    %v1185 = vshrl.u32 %v1184, 7
    %v1186 = vsub.s32 7, %v1185
    %v1187 = vrot.slane %v45, %v1186
    %1188 = vmatprep.subr.mxu0 0.0
    %1189 = vmatpush1.msra.mxu0 %v1183
    %1190 = vmatprep.subr.mxu0 0.0
    %1191 = vmatpush1.msra.mxu0 %v1182
    %1192 = vmatprep.subr.mxu0 0.0
    %1193 = vmatpush1.msra.mxu0 %v1181
    %1194 = vmatprep.subr.mxu0 0.0
    %1195 = vmatpush1.msra.mxu0 %v1180
    %1196 = vmatprep.subr.mxu0 0.0
    %1197 = vmatpush1.msra.mxu0 %v1179
    %1198 = vmatprep.subr.mxu0 0.0
    %1199 = vmatpush1.msra.mxu0 %v1178
    %1200 = vmatprep.subr.mxu0 0.0
    %1201 = vmatpush1.msra.mxu0 %v1177
    %1202 = vmatprep.subr.mxu0 0.0
    %1203 = vmatpush1.msra.mxu0 %v1176
    %1204 = vmatprep.subr.mxu0 0.0
    %1205 = vmatpush1.msra.mxu0 %v1175
    %1206 = vmatprep.subr.mxu0 0.0
    %1207 = vmatpush1.msra.mxu0 %v1174
    %1208 = vmatprep.subr.mxu0 0.0
    %1209 = vmatpush1.msra.mxu0 %v1173
    %1210 = vmatprep.subr.mxu0 0.0
    %1211 = vmatpush1.msra.mxu0 %v1172
    %1212 = vmatprep.subr.mxu0 0.0
    %1213 = vmatpush1.msra.mxu0 %v1171
    %1214 = vmatprep.subr.mxu0 0.0
    %1215 = vmatpush1.msra.mxu0 %v1170
    %1216 = vmatprep.subr.mxu0 0.0
    %1217 = vmatpush1.msra.mxu0 %v1169
    %1218 = vmatprep.subr.mxu0 0.0
    %1219 = vmatpush1.msra.mxu0 %v1168
    %1220 = vmatprep.subr.mxu0 0.0
    %1221 = vmatpush2.msra.mxu0 0.0
    %1222 = vmatprep.subr.mxu0 0.0
    %1223 = vmatpush2.msra.mxu0 0.0
    %1224 = vmatprep.subr.mxu0 0.0
    %1225 = vmatpush2.msra.mxu0 0.0
    %1226 = vmatprep.subr.mxu0 0.0
    %1227 = vmatpush2.msra.mxu0 0.0
    %1228 = vmatprep.subr.mxu0 0.0
    %1229 = vmatpush2.msra.mxu0 0.0
    %1230 = vmatprep.subr.mxu0 0.0
    %1231 = vmatpush2.msra.mxu0 0.0
    %1232 = vmatprep.subr.mxu0 0.0
    %1233 = vmatpush2.msra.mxu0 0.0
    %1234 = vmatprep.subr.mxu0 0.0
    %1235 = vmatpush2.msra.mxu0 0.0
    %1236 = vmatprep.subr.mxu0 0.0
    %1237 = vmatpush2.msra.mxu0 0.0
    %1238 = vmatprep.subr.mxu0 0.0
    %1239 = vmatpush2.msra.mxu0 0.0
    %1240 = vmatprep.subr.mxu0 0.0
    %1241 = vmatpush2.msra.mxu0 0.0
    %1242 = vmatprep.subr.mxu0 0.0
    %1243 = vmatpush2.msra.mxu0 0.0
    %1244 = vmatprep.subr.mxu0 0.0
    %1245 = vmatpush2.msra.mxu0 0.0
    %1246 = vmatprep.subr.mxu0 0.0
    %1247 = vmatpush2.msra.mxu0 0.0
    %1248 = vmatprep.subr.mxu0 0.0
    %1249 = vmatpush2.msra.mxu0 0.0
    %1250 = vmatprep.subr.mxu0 0.0
    %1251 = vmatpush2.msra.mxu0 0.0
    %1252 = vmatprep.mubr.f32.mxu0 0.0
    %1253 = vmatmul.mubr.f32.gmra.mxu0 %v1164
    %v1254 = vpop.f32.mrf.mxu0
    %v1255 = vadd.f32 %v1187, %v1254
    %v1256 = vpop.f32.mrf.mxu0
    %1257 = vmatprep.mubr.f32.mxu0 0.0
    %1258 = vmatmul.mubr.f32.gmra.mxu0 %v1165
    %v1259 = vpop.f32.mrf.mxu0
    %v1260 = vadd.f32 %v1187, %v1259
    %v1261 = vpop.f32.mrf.mxu0
    %1262 = vmatprep.mubr.f32.mxu0 0.0
    %1263 = vmatmul.mubr.f32.gmra.mxu0 %v1166
    %v1264 = vpop.f32.mrf.mxu0
    %v1265 = vadd.f32 %v1187, %v1264
    %v1266 = vpop.f32.mrf.mxu0
    %1267 = vmatprep.mubr.f32.mxu0 0.0
    %1268 = vmatmul.mubr.f32.gmra.mxu0 %v1167
    %v1269 = vpop.f32.mrf.mxu0
    %v1270 = vadd.f32 %v1187, %v1269
    %v1271 = vpop.f32.mrf.mxu0
    %1272 = vdwg.mxu0
    %v1273 = vmul.f32 %v71, %v1255
    %v1274 = vmul.f32 %v72, %v1260
    %v1275 = vmul.f32 %v73, %v1265
    %v1276 = vmul.f32 %v74, %v1270
    %v1277 = vadd.f32 %v955, %v1273
    %v1278 = vadd.f32 %v956, %v1274
    %v1279 = vadd.f32 %v957, %v1275
    %v1280 = vadd.f32 %v958, %v1276
    %1281 = vst.msk [vmem:[#allocation2] sm:$0xff] %vm80, %v1277
    %1282 = vst.msk [vmem:[#allocation2 + $0x8] sm:$0xff] %vm80, %v1278
    %1283 = vst.msk [vmem:[#allocation2 + $0x10] sm:$0xff] %vm80, %v1279
    %1284 = vst.msk [vmem:[#allocation2 + $0x18] sm:$0xff] %vm80, %v1280
    // Predicated region
    $region46: #{cross_attn_block.1} parent=1 // pred_check
      _
    $region47: #{cross_attn_block.1} parent=1 // pred_check_branch
      %1286 = sbr.rel (0) target = $region49
    $region48: #{cross_attn_block.1} parent=1 // pred_region
      %s1288 = ssub.s32 512, 512
      %1289 = vsyncadd [#allocation3], %s1288
      %s1290 = sshll.u32 [#allocation2], 4
      %s1291 = int_to_ptr.vmem [resolvable:$true] %s1290
      %1296 = dma.vmem_to_hbm [thread:$0]  %s1291, 512, %s11, [#allocation3], 128, 128, 8
    $region49: #{cross_attn_block.1} parent=1 // pred_fallthru
      _
    // Predicated region
    $region50: #{cross_attn_block.1} parent=1 // pred_check
      _
    $region51: #{cross_attn_block.1} parent=1 // pred_check_branch
      %1298 = sbr.rel (0) target = $region53
    $region52: #{cross_attn_block.1} parent=1 // pred_region
      %1299 = dma.done [#allocation3], 512
    $region53: #{cross_attn_block.1} parent=1 // pred_fallthru
      _
    %1300 = vsyncpa [#allocation3], 1

</llo_original>
